<compile_context>
chip_gen: v6e
topology: v6e:2x2x1
jax: 0.10.0
libtpu: 0.0.40
codegen_flags: <defaults>
</compile_context>

<pallas_src>
import numpy as np
import jax
import jax.numpy as jnp
from jax.experimental import pallas as pl
from jax.experimental.pallas import tpu as pltpu

STATE_SIZE = 29
HIDDEN1_UNITS = 300
HIDDEN2_UNITS = 600
ACTION_SIZE = 3

# Lane-dense padded sizes (multiples of 128). Padded rows/cols are zero-filled
# so they contribute nothing to the matmuls / reductions.
H1_PAD = 384
H2_PAD = 640
A_PAD = 128

_HALF_LOG_2PI = 0.5 * float(np.log(2.0 * np.pi))


# ---------------------------------------------------------------------------
# Fused Pallas kernel: MLP + sample + squash(row 0) + log-density
# ---------------------------------------------------------------------------
def actor_fused_kernel(x_ref, w1_ref, b1_ref, w2_ref, b2_ref, w3_ref, b3_ref,
                       logstd_ref, eps_ref, mu_ref, act_ref, lp_ref):
    # ---- 3-layer MLP: bf16 MXU operands, f32 accumulation, f32 elementwise ----
    x = x_ref[...].astype(jnp.bfloat16)
    h1 = jnp.dot(x, w1_ref[...], preferred_element_type=jnp.float32) + b1_ref[...]
    h1 = jnp.maximum(h1, 0.0)
    h2 = jnp.dot(h1.astype(jnp.bfloat16), w2_ref[...],
                 preferred_element_type=jnp.float32) + b2_ref[...]
    h2 = jnp.maximum(h2, 0.0)
    mu = jnp.dot(h2.astype(jnp.bfloat16), w3_ref[...],
                 preferred_element_type=jnp.float32) + b3_ref[...]      # (B, A_PAD)
    mu_ref[...] = mu

    # ---- torch.normal(mu, sigma) via precomputed eps (reparameterized) ----
    logstd = logstd_ref[...]                       # (1, A_PAD); padded lanes are 0
    sigma = jnp.exp(logstd)                        # EUP
    sample = mu + sigma * eps_ref[...]             # (B, A_PAD)

    # ---- squash first sampled row: lane0 -> tanh, lanes1,2 -> sigmoid ----
    lane = jax.lax.broadcasted_iota(jnp.int32, (1, A_PAD), 1)
    valid = lane < ACTION_SIZE
    a0 = sample[0:1, :]                            # action.data[0]
    squashed = jnp.where(lane == 0, jnp.tanh(a0), 1.0 / (1.0 + jnp.exp(-a0)))
    act = jnp.where(valid, squashed, 0.0)          # zero padded lanes
    act_ref[...] = act

    # ---- log_normal_density(action, mu, logstd, sigma), summed over dim=1 ----
    var = sigma * sigma
    dens = -(act - mu) ** 2 / (2.0 * var) - _HALF_LOG_2PI - logstd
    dens = jnp.where(valid, dens, 0.0)             # (B, A_PAD)
    lp = jnp.sum(dens, axis=1, keepdims=True)      # (B, 1) on XLU
    # lane-dense store (unmasked vst); wrapper slices [:, :1]
    lp_ref[...] = jnp.broadcast_to(lp, lp_ref.shape)


def _vmem():
    return pl.BlockSpec(memory_space=pltpu.MemorySpace.VMEM)


def actor_pallas(x, w1, b1, w2, b2, w3, b3, logstd, eps):
    B = x.shape[0]
    return pl.pallas_call(
        actor_fused_kernel,
        out_shape=(
            jax.ShapeDtypeStruct((B, A_PAD), jnp.float32),   # mu (lane-padded)
            jax.ShapeDtypeStruct((1, A_PAD), jnp.float32),   # squashed action row
            jax.ShapeDtypeStruct((B, A_PAD), jnp.float32),   # logprob (lane-dense)
        ),
        in_specs=[_vmem() for _ in range(9)],
        out_specs=(_vmem(), _vmem(), _vmem()),
    )(x, w1, b1, w2, b2, w3, b3, logstd, eps)


# ---------------------------------------------------------------------------
# Parameter init (PyTorch-Linear-style uniform bounds), padded + bf16 weights
# ---------------------------------------------------------------------------
def init_params(key):
    def linear(k, fan_in, fan_out, fan_in_pad, fan_out_pad):
        kw, kb = jax.random.split(k)
        bound = 1.0 / np.sqrt(fan_in)
        w = jax.random.uniform(kw, (fan_in, fan_out), jnp.float32, -bound, bound)
        b = jax.random.uniform(kb, (1, fan_out), jnp.float32, -bound, bound)
        # zero-pad to lane-dense shapes; padded rows/cols contribute nothing.
        w = jnp.pad(w, ((0, fan_in_pad - fan_in), (0, fan_out_pad - fan_out)))
        b = jnp.pad(b, ((0, 0), (0, fan_out_pad - fan_out)))
        return w.astype(jnp.bfloat16), b           # bf16 weights halve weight DMA

    k1, k2, k3 = jax.random.split(key, 3)
    w1, b1 = linear(k1, STATE_SIZE, HIDDEN1_UNITS, STATE_SIZE, H1_PAD)
    w2, b2 = linear(k2, HIDDEN1_UNITS, HIDDEN2_UNITS, H1_PAD, H2_PAD)
    w3, b3 = linear(k3, HIDDEN2_UNITS, ACTION_SIZE, H2_PAD, A_PAD)
    logstd = jnp.zeros((1, A_PAD), jnp.float32)    # nn.Parameter(torch.zeros(3))
    return (w1, b1, w2, b2, w3, b3, logstd)


# ---------------------------------------------------------------------------
# Forward (mirrors ActorNetwork.forward)
# ---------------------------------------------------------------------------
@jax.jit
def actor_forward(params, x, sample_key):
    w1, b1, w2, b2, w3, b3, logstd = params
    B = x.shape[0]
    eps = jax.random.normal(sample_key, (B, A_PAD), jnp.float32)
    mu_p, act_p, lp_p = actor_pallas(x, w1, b1, w2, b2, w3, b3, logstd, eps)
    return act_p[:, :ACTION_SIZE], lp_p[:, :1], mu_p[:, :ACTION_SIZE]


# ---------------------------------------------------------------------------
# Pure-JAX reference (same dtypes / same eps) for a sanity check
# ---------------------------------------------------------------------------
def reference_forward(params, x, eps):
    w1, b1, w2, b2, w3, b3, logstd = params
    h1 = jnp.maximum(jnp.dot(x.astype(jnp.bfloat16), w1,
                             preferred_element_type=jnp.float32) + b1, 0.0)
    h2 = jnp.maximum(jnp.dot(h1.astype(jnp.bfloat16), w2,
                             preferred_element_type=jnp.float32) + b2, 0.0)
    mu = jnp.dot(h2.astype(jnp.bfloat16), w3,
                 preferred_element_type=jnp.float32) + b3
    sigma = jnp.exp(logstd)
    sample = mu + sigma * eps
    a0 = sample[0:1, :]
    lane = jnp.arange(A_PAD)[None, :]
    squashed = jnp.where(lane == 0, jnp.tanh(a0), 1.0 / (1.0 + jnp.exp(-a0)))
    act = jnp.where(lane < ACTION_SIZE, squashed, 0.0)
    var = sigma * sigma
    dens = -(act - mu) ** 2 / (2.0 * var) - _HALF_LOG_2PI - logstd
    dens = jnp.where(lane < ACTION_SIZE, dens, 0.0)
    lp = jnp.sum(dens, axis=1, keepdims=True)
    return act[:, :ACTION_SIZE], lp, mu[:, :ACTION_SIZE]


if __name__ == "__main__":
    key = jax.random.PRNGKey(0)
    kp, kx, ks = jax.random.split(key, 3)

    params = init_params(kp)
    batch = 2
    x = jax.random.normal(kx, (batch, STATE_SIZE), jnp.float32)

    action, logprob, mu = actor_forward(params, x, ks)
    jax.block_until_ready((action, logprob, mu))

    # sanity check against a pure-JAX reference using identical eps / bf16 weights
    eps = jax.random.normal(ks, (batch, A_PAD), jnp.float32)
    act_r, lp_r, mu_r = reference_forward(params, x, eps)
    np.testing.assert_allclose(np.asarray(mu), np.asarray(mu_r), rtol=1e-2, atol=1e-2)
    np.testing.assert_allclose(np.asarray(action), np.asarray(act_r), rtol=1e-2, atol=1e-2)
    np.testing.assert_allclose(np.asarray(logprob), np.asarray(lp_r), rtol=1e-2, atol=1e-2)

    assert action.shape == (1, ACTION_SIZE)
    assert logprob.shape == (batch, 1)
    assert mu.shape == (batch, ACTION_SIZE)
    print("KERNEL_OK")
</pallas_src>

<mosaic_0001>
module attributes {stable_mosaic.version = 11 : i64} {
  func.func @actor_fused_kernel(%arg0: memref<2x29xf32, #tpu.memory_space<vmem>>, %arg1: memref<29x384xbf16, #tpu.memory_space<vmem>>, %arg2: memref<1x384xf32, #tpu.memory_space<vmem>>, %arg3: memref<384x640xbf16, #tpu.memory_space<vmem>>, %arg4: memref<1x640xf32, #tpu.memory_space<vmem>>, %arg5: memref<640x128xbf16, #tpu.memory_space<vmem>>, %arg6: memref<1x128xf32, #tpu.memory_space<vmem>>, %arg7: memref<1x128xf32, #tpu.memory_space<vmem>>, %arg8: memref<2x128xf32, #tpu.memory_space<vmem>>, %arg9: memref<2x128xf32, #tpu.memory_space<vmem>>, %arg10: memref<1x128xf32, #tpu.memory_space<vmem>>, %arg11: memref<2x128xf32, #tpu.memory_space<vmem>>) attributes {dimension_semantics = [], scalar_prefetch = 0 : i64, scratch_operands = 0 : i64, tpu.core_type = #tpu.core_type<tc>} {
    %c0 = arith.constant 0 : index
    %c0_0 = arith.constant 0 : index
    %0 = vector.load %arg0[%c0, %c0_0] : memref<2x29xf32, #tpu.memory_space<vmem>>, vector<2x29xf32>
    %1 = arith.truncf %0 : vector<2x29xf32> to vector<2x29xbf16>
    %c0_1 = arith.constant 0 : index
    %c0_2 = arith.constant 0 : index
    %2 = vector.load %arg1[%c0_1, %c0_2] : memref<29x384xbf16, #tpu.memory_space<vmem>>, vector<29x384xbf16>
    %cst = arith.constant dense<0.000000e+00> : vector<2x384xf32>
    %3 = tpu.matmul %1, %2, %cst {dimension_numbers = #tpu.dot_dimension_numbers<[1], [0], [0], [1], [0, 0, 1, 1], [], []>} : vector<2x29xbf16>, vector<29x384xbf16>, vector<2x384xf32> -> vector<2x384xf32>
    %c0_3 = arith.constant 0 : index
    %c0_4 = arith.constant 0 : index
    %4 = vector.load %arg2[%c0_3, %c0_4] : memref<1x384xf32, #tpu.memory_space<vmem>>, vector<1x384xf32>
    %5 = vector.broadcast %4 : vector<1x384xf32> to vector<2x384xf32>
    %6 = arith.addf %3, %5 : vector<2x384xf32>
    %cst_5 = arith.constant 0.000000e+00 : f32
    %7 = vector.broadcast %cst_5 : f32 to vector<2x384xf32>
    %8 = arith.maximumf %6, %7 : vector<2x384xf32>
    %9 = arith.truncf %8 : vector<2x384xf32> to vector<2x384xbf16>
    %c0_6 = arith.constant 0 : index
    %c0_7 = arith.constant 0 : index
    %10 = vector.load %arg3[%c0_6, %c0_7] : memref<384x640xbf16, #tpu.memory_space<vmem>>, vector<384x640xbf16>
    %cst_8 = arith.constant dense<0.000000e+00> : vector<2x640xf32>
    %11 = tpu.matmul %9, %10, %cst_8 {dimension_numbers = #tpu.dot_dimension_numbers<[1], [0], [0], [1], [0, 0, 1, 1], [], []>} : vector<2x384xbf16>, vector<384x640xbf16>, vector<2x640xf32> -> vector<2x640xf32>
    %c0_9 = arith.constant 0 : index
    %c0_10 = arith.constant 0 : index
    %12 = vector.load %arg4[%c0_9, %c0_10] : memref<1x640xf32, #tpu.memory_space<vmem>>, vector<1x640xf32>
    %13 = vector.broadcast %12 : vector<1x640xf32> to vector<2x640xf32>
    %14 = arith.addf %11, %13 : vector<2x640xf32>
    %cst_11 = arith.constant 0.000000e+00 : f32
    %15 = vector.broadcast %cst_11 : f32 to vector<2x640xf32>
    %16 = arith.maximumf %14, %15 : vector<2x640xf32>
    %17 = arith.truncf %16 : vector<2x640xf32> to vector<2x640xbf16>
    %c0_12 = arith.constant 0 : index
    %c0_13 = arith.constant 0 : index
    %18 = vector.load %arg5[%c0_12, %c0_13] : memref<640x128xbf16, #tpu.memory_space<vmem>>, vector<640x128xbf16>
    %cst_14 = arith.constant dense<0.000000e+00> : vector<2x128xf32>
    %19 = tpu.matmul %17, %18, %cst_14 {dimension_numbers = #tpu.dot_dimension_numbers<[1], [0], [0], [1], [0, 0, 1, 1], [], []>} : vector<2x640xbf16>, vector<640x128xbf16>, vector<2x128xf32> -> vector<2x128xf32>
    %c0_15 = arith.constant 0 : index
    %c0_16 = arith.constant 0 : index
    %20 = vector.load %arg6[%c0_15, %c0_16] : memref<1x128xf32, #tpu.memory_space<vmem>>, vector<1x128xf32>
    %21 = vector.broadcast %20 : vector<1x128xf32> to vector<2x128xf32>
    %22 = arith.addf %19, %21 : vector<2x128xf32>
    %c0_17 = arith.constant 0 : index
    %c0_18 = arith.constant 0 : index
    %23 = vector.load %arg9[%c0_17, %c0_18] : memref<2x128xf32, #tpu.memory_space<vmem>>, vector<2x128xf32>
    tpu.vector_store %arg9[%c0_17, %c0_18], %22 {strides = array<i32>} : memref<2x128xf32, #tpu.memory_space<vmem>>, vector<2x128xf32>,
    %c0_19 = arith.constant 0 : index
    %c0_20 = arith.constant 0 : index
    %24 = vector.load %arg7[%c0_19, %c0_20] : memref<1x128xf32, #tpu.memory_space<vmem>>, vector<1x128xf32>
    %25 = math.exp %24 : vector<1x128xf32>
    %c0_21 = arith.constant 0 : index
    %c0_22 = arith.constant 0 : index
    %26 = vector.load %arg8[%c0_21, %c0_22] : memref<2x128xf32, #tpu.memory_space<vmem>>, vector<2x128xf32>
    %27 = vector.broadcast %25 : vector<1x128xf32> to vector<2x128xf32>
    %28 = arith.mulf %27, %26 : vector<2x128xf32>
    %29 = arith.addf %22, %28 : vector<2x128xf32>
    %30 = tpu.iota {dimensions = array<i32: 1>} : vector<1x128xi32>
    %c3_i32 = arith.constant 3 : i32
    %31 = vector.broadcast %c3_i32 : i32 to vector<1x128xi32>
    %32 = arith.cmpi slt, %30, %31 : vector<1x128xi32>
    %33 = vector.extract_strided_slice %29 {offsets = [0, 0], sizes = [1, 128], strides = [1, 1]} : vector<2x128xf32> to vector<1x128xf32>
    %c0_i32 = arith.constant 0 : i32
    %34 = vector.broadcast %c0_i32 : i32 to vector<1x128xi32>
    %35 = arith.cmpi eq, %30, %34 : vector<1x128xi32>
    %36 = math.tanh %33 : vector<1x128xf32>
    %cst_23 = arith.constant 0.000000e+00 : f32
    %37 = vector.broadcast %cst_23 : f32 to vector<1x128xf32>
    %38 = arith.subf %37, %33 : vector<1x128xf32>
    %39 = math.exp %38 : vector<1x128xf32>
    %cst_24 = arith.constant 1.000000e+00 : f32
    %40 = vector.broadcast %cst_24 : f32 to vector<1x128xf32>
    %41 = arith.addf %40, %39 : vector<1x128xf32>
    %cst_25 = arith.constant 1.000000e+00 : f32
    %42 = vector.broadcast %cst_25 : f32 to vector<1x128xf32>
    %43 = arith.divf %42, %41 : vector<1x128xf32>
    %44 = arith.select %35, %36, %43 : vector<1x128xi1>, vector<1x128xf32>
    %cst_26 = arith.constant 0.000000e+00 : f32
    %45 = vector.broadcast %cst_26 : f32 to vector<1x128xf32>
    %46 = arith.select %32, %44, %45 : vector<1x128xi1>, vector<1x128xf32>
    %c0_27 = arith.constant 0 : index
    %c0_28 = arith.constant 0 : index
    %47 = vector.load %arg10[%c0_27, %c0_28] : memref<1x128xf32, #tpu.memory_space<vmem>>, vector<1x128xf32>
    tpu.vector_store %arg10[%c0_27, %c0_28], %46 {strides = array<i32>} : memref<1x128xf32, #tpu.memory_space<vmem>>, vector<1x128xf32>,
    %48 = arith.mulf %25, %25 : vector<1x128xf32>
    %49 = vector.broadcast %46 : vector<1x128xf32> to vector<2x128xf32>
    %50 = arith.subf %49, %22 : vector<2x128xf32>
    %51 = arith.mulf %50, %50 : vector<2x128xf32>
    %cst_29 = arith.constant 0.000000e+00 : f32
    %52 = vector.broadcast %cst_29 : f32 to vector<2x128xf32>
    %53 = arith.subf %52, %51 : vector<2x128xf32>
    %cst_30 = arith.constant 2.000000e+00 : f32
    %54 = vector.broadcast %cst_30 : f32 to vector<1x128xf32>
    %55 = arith.mulf %54, %48 : vector<1x128xf32>
    %56 = vector.broadcast %55 : vector<1x128xf32> to vector<2x128xf32>
    %57 = arith.divf %53, %56 : vector<2x128xf32>
    %cst_31 = arith.constant 0.918938517 : f32
    %58 = vector.broadcast %cst_31 : f32 to vector<2x128xf32>
    %59 = arith.subf %57, %58 : vector<2x128xf32>
    %60 = vector.broadcast %24 : vector<1x128xf32> to vector<2x128xf32>
    %61 = arith.subf %59, %60 : vector<2x128xf32>
    %cst_32 = arith.constant 0.000000e+00 : f32
    %62 = vector.shape_cast %32 : vector<1x128xi1> to vector<1x128xi1>
    %63 = vector.broadcast %62 : vector<1x128xi1> to vector<2x128xi1>
    %64 = vector.broadcast %cst_32 : f32 to vector<2x128xf32>
    %65 = arith.select %63, %61, %64 : vector<2x128xi1>, vector<2x128xf32>
    %cst_33 = arith.constant dense<0.000000e+00> : vector<2xf32>
    %66 = vector.multi_reduction <add>, %65, %cst_33 [1] : vector<2x128xf32> to vector<2xf32>
    %67 = vector.shape_cast %66 : vector<2xf32> to vector<2x1xf32>
    %68 = vector.shape_cast %67 : vector<2x1xf32> to vector<2x1xf32>
    %69 = vector.broadcast %68 : vector<2x1xf32> to vector<2x128xf32>
    %c0_34 = arith.constant 0 : index
    %c0_35 = arith.constant 0 : index
    %70 = vector.load %arg11[%c0_34, %c0_35] : memref<2x128xf32, #tpu.memory_space<vmem>>, vector<2x128xf32>
    tpu.vector_store %arg11[%c0_34, %c0_35], %69 {strides = array<i32>} : memref<2x128xf32, #tpu.memory_space<vmem>>, vector<2x128xf32>,
    return
  }
}

</mosaic_0001>

<llo_original>
// kernel: actor_forward.1
$region0: #{actor_forward.1}
  #allocation0 [shape = 'u32[]', space=smem, size = 0x4, offset = 0x4, fixed_abs, tag = 'smem constant byte address 0x4 - core index']
  #allocation1 [shape = 'u32[144,128]{1,0:T(1,128)}', space=vmem, size = 0x12000, scoped, tag = 'internal scratch']
  %s0 = inlined_call_operand.vmem [shape: f32[2,29], index: 0, kind: input, shape index: {}]
  %s1 = inlined_call_operand.hbm [shape: bf16[29,384], index: 1, kind: input, shape index: {}]
  %s2 = inlined_call_operand.vmem [shape: f32[1,384], index: 2, kind: input, shape index: {}]
  %s3 = inlined_call_operand.hbm [shape: bf16[384,640], index: 3, kind: input, shape index: {}]
  %s4 = inlined_call_operand.vmem [shape: f32[1,640], index: 4, kind: input, shape index: {}]
  %s5 = inlined_call_operand.hbm [shape: bf16[640,128], index: 5, kind: input, shape index: {}]
  %s6 = inlined_call_operand.vmem [shape: f32[1,128], index: 6, kind: input, shape index: {}]
  %s7 = inlined_call_operand.vmem [shape: f32[1,128], index: 7, kind: input, shape index: {}]
  %s8 = inlined_call_operand.vmem [shape: f32[2,128], index: 8, kind: input, shape index: {}]
  %s9 = inlined_call_operand.hbm [shape: f32[2,128], index: 9, kind: output, shape index: {0}]
  %s10 = inlined_call_operand.hbm [shape: f32[1,128], index: 10, kind: output, shape index: {1}]
  %s11 = inlined_call_operand.vmem [shape: f32[2,128], index: 11, kind: output, shape index: {2}]
  %12 = xla_tuple %s9, %s10, %s11
  %s13 = sld [smem:[#allocation0]]
  $region74: #{actor_forward.1} parent=0
    _
  %s15 = ssub.s32 1, %s13
  %s16 = scalar_select 0, %s15, %s13
  $region1: #{actor_forward.1} parent=0
    #allocation2 [shape = 'u8[24576]{0}', space=vmem, size = 0x6000, scoped, tag = 'input window, operand 1, single buffered']
    #allocation3 [shape = 's32[1]{0}', space=sflag, size = 0x4, scoped, tag = 'scoped memory for actor_forward.1']
    #allocation4 [shape = 's32[1]{0}', space=sflag, size = 0x4, scoped, tag = 'scoped memory for actor_forward.1']
    #allocation5 [shape = 'u8[491520]{0}', space=vmem, size = 0x78000, scoped, tag = 'input window, operand 3, single buffered']
    #allocation6 [shape = 's32[1]{0}', space=sflag, size = 0x4, scoped, tag = 'scoped memory for actor_forward.1']
    #allocation7 [shape = 'u8[163840]{0}', space=vmem, size = 0x28000, scoped, tag = 'input window, operand 5, single buffered']
    #allocation8 [shape = 'u8[1024]{0}', space=vmem, size = 0x400, scoped, tag = 'output window, operand 0, single buffered']
    #allocation9 [shape = 'u8[512]{0}', space=vmem, size = 0x400, scoped, tag = 'output window, operand 1, single buffered']
    #allocation10 [shape = 's32[1]{0}', space=sflag, size = 0x4, scoped, tag = 'scoped memory for actor_forward.1']
    %17 = vsyncpa [#allocation3], 0
    %18 = vsyncpa [#allocation6], 0
    %19 = vsyncpa [#allocation4], 0
    %20 = vsyncpa [#allocation10], 0
    // Predicated region
    $region2: #{actor_forward.1} parent=1 // pred_check
      _
    $region3: #{actor_forward.1} parent=1 // pred_check_branch
      %22 = sbr.rel (0) target = $region5
    $region4: #{actor_forward.1} parent=1 // pred_region
      _
    $region5: #{actor_forward.1} parent=1 // pred_fallthru
      _
    // Predicated region
    $region6: #{actor_forward.1} parent=1 // pred_check
      _
    $region7: #{actor_forward.1} parent=1 // pred_check_branch
      %24 = sbr.rel (0) target = $region9
    $region8: #{actor_forward.1} parent=1 // pred_region
      %s26 = ssub.s32 768, 768
      %27 = vsyncadd [#allocation3], %s26
      %s28 = sshll.u32 [#allocation2], 4
      %s29 = int_to_ptr.vmem [resolvable:$true] %s28
      %34 = dma.hbm_to_vmem [thread:$0]  %s1, 768, %s29, [#allocation3], 192, 192, 12
    $region9: #{actor_forward.1} parent=1 // pred_fallthru
      _
    // Predicated region
    $region10: #{actor_forward.1} parent=1 // pred_check
      _
    $region11: #{actor_forward.1} parent=1 // pred_check_branch
      %36 = sbr.rel (0) target = $region13
    $region12: #{actor_forward.1} parent=1 // pred_region
      _
    $region13: #{actor_forward.1} parent=1 // pred_fallthru
      _
    // Predicated region
    $region14: #{actor_forward.1} parent=1 // pred_check
      _
    $region15: #{actor_forward.1} parent=1 // pred_check_branch
      %38 = sbr.rel (0) target = $region17
    $region16: #{actor_forward.1} parent=1 // pred_region
      %s40 = ssub.s32 15360, 15360
      %41 = vsyncadd [#allocation6], %s40
      %s42 = sshll.u32 [#allocation5], 4
      %s43 = int_to_ptr.vmem [resolvable:$true] %s42
      %48 = dma.hbm_to_vmem [thread:$0]  %s3, 15360, %s43, [#allocation6], 320, 320, 20
    $region17: #{actor_forward.1} parent=1 // pred_fallthru
      _
    // Predicated region
    $region18: #{actor_forward.1} parent=1 // pred_check
      _
    $region19: #{actor_forward.1} parent=1 // pred_check_branch
      %50 = sbr.rel (0) target = $region21
    $region20: #{actor_forward.1} parent=1 // pred_region
      _
    $region21: #{actor_forward.1} parent=1 // pred_fallthru
      _
    // Predicated region
    $region22: #{actor_forward.1} parent=1 // pred_check
      _
    $region23: #{actor_forward.1} parent=1 // pred_check_branch
      %52 = sbr.rel (0) target = $region25
    $region24: #{actor_forward.1} parent=1 // pred_region
      %s54 = ssub.s32 5120, 5120
      %55 = vsyncadd [#allocation6], %s54
      %s56 = sshll.u32 [#allocation7], 4
      %s57 = int_to_ptr.vmem [resolvable:$true] %s56
      %62 = dma.hbm_to_vmem [thread:$0]  %s5, 5120, %s57, [#allocation6], 64, 64, 4
    $region25: #{actor_forward.1} parent=1 // pred_fallthru
      _
    // Predicated region
    $region26: #{actor_forward.1} parent=1 // pred_check
      _
    $region27: #{actor_forward.1} parent=1 // pred_check_branch
      %64 = sbr.rel (0) target = $region29
    $region28: #{actor_forward.1} parent=1 // pred_region
      _
    $region29: #{actor_forward.1} parent=1 // pred_fallthru
      _
    // Predicated region
    $region30: #{actor_forward.1} parent=1 // pred_check
      _
    $region31: #{actor_forward.1} parent=1 // pred_check_branch
      %66 = sbr.rel (0) target = $region33
    $region32: #{actor_forward.1} parent=1 // pred_region
      _
    $region33: #{actor_forward.1} parent=1 // pred_fallthru
      _
    // Predicated region
    $region34: #{actor_forward.1} parent=1 // pred_check
      _
    $region35: #{actor_forward.1} parent=1 // pred_check_branch
      %68 = sbr.rel (0) target = $region37
    $region36: #{actor_forward.1} parent=1 // pred_region
      _
    $region37: #{actor_forward.1} parent=1 // pred_fallthru
      _
    // Predicated region
    $region38: #{actor_forward.1} parent=1 // pred_check
      _
    $region39: #{actor_forward.1} parent=1 // pred_check_branch
      %70 = sbr.rel (0) target = $region41
    $region40: #{actor_forward.1} parent=1 // pred_region
      %71 = dma.done [#allocation3], 768
    $region41: #{actor_forward.1} parent=1 // pred_fallthru
      _
    // Predicated region
    $region42: #{actor_forward.1} parent=1 // pred_check
      _
    $region43: #{actor_forward.1} parent=1 // pred_check_branch
      %73 = sbr.rel (0) target = $region45
    $region44: #{actor_forward.1} parent=1 // pred_region
      %74 = dma.done [#allocation6], 15360
    $region45: #{actor_forward.1} parent=1 // pred_fallthru
      _
    // Predicated region
    $region46: #{actor_forward.1} parent=1 // pred_check
      _
    $region47: #{actor_forward.1} parent=1 // pred_check_branch
      %76 = sbr.rel (0) target = $region49
    $region48: #{actor_forward.1} parent=1 // pred_region
      %77 = dma.done [#allocation6], 5120
    $region49: #{actor_forward.1} parent=1 // pred_fallthru
      _
    %v79 = vld [vmem:[%s0] sm:$0x3]
    %v80 = vpack.c.bf16 %v79, %v79
    %v81 = vld [vmem:[#allocation2] sm:$0xff]
    %v82 = vld [vmem:[#allocation2 + $0x8] sm:$0xf]
    %v83 = vld [vmem:[#allocation2 + $0xc] sm:$0xff]
    %v84 = vld [vmem:[#allocation2 + $0x14] sm:$0xf]
    %v85 = vld [vmem:[#allocation2 + $0x18] sm:$0xff]
    %v86 = vld [vmem:[#allocation2 + $0x20] sm:$0xf]
    %v87 = vld [vmem:[#allocation2 + $0x24] sm:$0x77]
    %v88 = vld [vmem:[#allocation2 + $0x2c] sm:$0x7]
    %v89 = vld [vmem:[%s2] sm:$0x7]
    %v91 = vlaneseq
    %v92 = vshrl.u32 %v91, 7
    %v93 = vsub.s32 0, %v92
    %v94 = vrot.slane %v89, %v93
    %v95 = vlaneseq
    %v96 = vshrl.u32 %v95, 7
    %v97 = vsub.s32 1, %v96
    %v98 = vrot.slane %v89, %v97
    %v99 = vlaneseq
    %v100 = vshrl.u32 %v99, 7
    %v101 = vsub.s32 2, %v100
    %v102 = vrot.slane %v89, %v101
    %v114 = vunpack.c.l.b16 %v81
    %v115 = vunpack.c.h.b16 %v81
    %v116 = vunpack.c.l.b16 %v82
    %v117 = vunpack.c.l.b16 %v83
    %v118 = vunpack.c.h.b16 %v83
    %v119 = vunpack.c.l.b16 %v84
    %v120 = vunpack.c.l.b16 %v85
    %v121 = vunpack.c.h.b16 %v85
    %v122 = vunpack.c.l.b16 %v86
    %v123 = vunpack.c.l.b16 %v87
    %v124 = vunpack.c.h.b16 %v87
    %v125 = vunpack.c.l.b16 %v88
    %v126 = vpack.c.b16 %v117, %v114
    %v127 = vpack.c.b16 %v118, %v115
    %v128 = vpack.c.b16 %v119, %v116
    %v129 = vpack.c.b16 %v123, %v120
    %v130 = vpack.c.b16 %v124, %v121
    %v131 = vpack.c.b16 %v125, %v122
    %vm135 = vcmask 236544
    %v137 = vsel %vm135, %v80, 0
    %vm139 = vcmask 1045504
    %vm140 = vcmask 1046528
    %v141 = vsel %vm139, 4294967295, 65535
    %v142 = vsel %vm140, %v141, 0
    %v144 = vand.u32 %v129, %v142
    %v147 = vand.u32 %v130, %v142
    %v150 = vand.u32 %v131, %v142
    %152 = vmatprep.subr.bf16.mxu0 0
    %153 = vmatpush1.bf16.msra.mxu0 0
    %154 = vmatprep.subr.bf16.mxu0 0
    %155 = vmatpush1.bf16.msra.mxu0 0
    %156 = vmatprep.subr.bf16.mxu0 0
    %157 = vmatpush1.bf16.msra.mxu0 0
    %158 = vmatprep.subr.bf16.mxu0 0
    %159 = vmatpush1.bf16.msra.mxu0 0
    %160 = vmatprep.subr.bf16.mxu0 0
    %161 = vmatpush1.bf16.msra.mxu0 0
    %162 = vmatprep.subr.bf16.mxu0 0
    %163 = vmatpush1.bf16.msra.mxu0 0
    %164 = vmatprep.subr.bf16.mxu0 %v147
    %165 = vmatpush1.bf16.msra.mxu0 %v144
    %166 = vmatprep.subr.bf16.mxu0 %v127
    %167 = vmatpush1.bf16.msra.mxu0 %v126
    %168 = vmatprep.subr.bf16.mxu0 0
    %169 = vmatpush2.bf16.msra.mxu0 0
    %170 = vmatprep.subr.bf16.mxu0 0
    %171 = vmatpush2.bf16.msra.mxu0 0
    %172 = vmatprep.subr.bf16.mxu0 0
    %173 = vmatpush2.bf16.msra.mxu0 0
    %174 = vmatprep.subr.bf16.mxu0 0
    %175 = vmatpush2.bf16.msra.mxu0 0
    %176 = vmatprep.subr.bf16.mxu0 0
    %177 = vmatpush2.bf16.msra.mxu0 0
    %178 = vmatprep.subr.bf16.mxu0 0
    %179 = vmatpush2.bf16.msra.mxu0 0
    %180 = vmatprep.subr.bf16.mxu0 0
    %181 = vmatpush2.bf16.msra.mxu0 0
    %182 = vmatprep.subr.bf16.mxu0 0
    %183 = vmatpush2.bf16.msra.mxu0 0
    %184 = vmatprep.mubr.bf16.mxu0 0
    %185 = vmatmul.mubr.bf16.gmra.mxu0 %v137
    %v186 = vpop.f32.mrf.mxu0
    %v187 = vadd.f32 %v94, %v186
    %v188 = vpop.f32.mrf.mxu0
    %v189 = vadd.f32 %v98, %v188
    %v190 = vpop.f32.mrf.mxu0
    %v191 = vpop.f32.mrf.mxu0
    %192 = vdwg.mxu0
    %193 = vmatprep.subr.bf16.mxu0 0
    %194 = vmatpush1.bf16.msra.mxu0 0
    %195 = vmatprep.subr.bf16.mxu0 0
    %196 = vmatpush1.bf16.msra.mxu0 0
    %197 = vmatprep.subr.bf16.mxu0 0
    %198 = vmatpush1.bf16.msra.mxu0 0
    %199 = vmatprep.subr.bf16.mxu0 0
    %200 = vmatpush1.bf16.msra.mxu0 0
    %201 = vmatprep.subr.bf16.mxu0 0
    %202 = vmatpush1.bf16.msra.mxu0 0
    %203 = vmatprep.subr.bf16.mxu0 0
    %204 = vmatpush1.bf16.msra.mxu0 0
    %205 = vmatprep.subr.bf16.mxu0 0
    %206 = vmatpush1.bf16.msra.mxu0 %v150
    %207 = vmatprep.subr.bf16.mxu0 0
    %208 = vmatpush1.bf16.msra.mxu0 %v128
    %209 = vmatprep.subr.bf16.mxu0 0
    %210 = vmatpush2.bf16.msra.mxu0 0
    %211 = vmatprep.subr.bf16.mxu0 0
    %212 = vmatpush2.bf16.msra.mxu0 0
    %213 = vmatprep.subr.bf16.mxu0 0
    %214 = vmatpush2.bf16.msra.mxu0 0
    %215 = vmatprep.subr.bf16.mxu0 0
    %216 = vmatpush2.bf16.msra.mxu0 0
    %217 = vmatprep.subr.bf16.mxu0 0
    %218 = vmatpush2.bf16.msra.mxu0 0
    %219 = vmatprep.subr.bf16.mxu0 0
    %220 = vmatpush2.bf16.msra.mxu0 0
    %221 = vmatprep.subr.bf16.mxu0 0
    %222 = vmatpush2.bf16.msra.mxu0 0
    %223 = vmatprep.subr.bf16.mxu0 0
    %224 = vmatpush2.bf16.msra.mxu0 0
    %225 = vmatprep.mubr.bf16.mxu0 0
    %226 = vmatmul.mubr.bf16.gmra.mxu0 %v137
    %v227 = vpop.f32.mrf.mxu0
    %v228 = vadd.f32 %v102, %v227
    %v229 = vpop.f32.mrf.mxu0
    %v230 = vpop.f32.mrf.mxu0
    %v231 = vpop.f32.mrf.mxu0
    %232 = vdwg.mxu0
    %v233 = vmax.f32 %v187, 0.0
    %v234 = vmax.f32 %v189, 0.0
    %v235 = vmax.f32 %v228, 0.0
    %v236 = vpack.c.bf16 %v233, %v233
    %v237 = vpack.c.bf16 %v234, %v234
    %v238 = vpack.c.bf16 %v235, %v235
    %v239 = vld [vmem:[#allocation5] sm:$0xff]
    %v240 = vld [vmem:[#allocation5 + $0x8] sm:$0xff]
    %v241 = vld [vmem:[#allocation5 + $0x10] sm:$0xf]
    %v242 = vld [vmem:[#allocation5 + $0x14] sm:$0xff]
    %v243 = vld [vmem:[#allocation5 + $0x1c] sm:$0xff]
    %v244 = vld [vmem:[#allocation5 + $0x24] sm:$0xf]
    %v245 = vld [vmem:[#allocation5 + $0x28] sm:$0xff]
    %v246 = vld [vmem:[#allocation5 + $0x30] sm:$0xff]
    %v247 = vld [vmem:[#allocation5 + $0x38] sm:$0xf]
    %v248 = vld [vmem:[#allocation5 + $0x3c] sm:$0xff]
    %v249 = vld [vmem:[#allocation5 + $0x44] sm:$0xff]
    %v250 = vld [vmem:[#allocation5 + $0x4c] sm:$0xf]
    %v251 = vld [vmem:[#allocation5 + $0x50] sm:$0xff]
    %v252 = vld [vmem:[#allocation5 + $0x58] sm:$0xff]
    %v253 = vld [vmem:[#allocation5 + $0x60] sm:$0xf]
    %v254 = vld [vmem:[#allocation5 + $0x64] sm:$0xff]
    %v255 = vld [vmem:[#allocation5 + $0x6c] sm:$0xff]
    %v256 = vld [vmem:[#allocation5 + $0x74] sm:$0xf]
    %v257 = vld [vmem:[#allocation5 + $0x78] sm:$0xff]
    %v258 = vld [vmem:[#allocation5 + $0x80] sm:$0xff]
    %v259 = vld [vmem:[#allocation5 + $0x88] sm:$0xf]
    %v260 = vld [vmem:[#allocation5 + $0x8c] sm:$0xff]
    %v261 = vld [vmem:[#allocation5 + $0x94] sm:$0xff]
    %v262 = vld [vmem:[#allocation5 + $0x9c] sm:$0xf]
    %v263 = vld [vmem:[#allocation5 + $0xa0] sm:$0xff]
    %v264 = vld [vmem:[#allocation5 + $0xa8] sm:$0xff]
    %v265 = vld [vmem:[#allocation5 + $0xb0] sm:$0xf]
    %v266 = vld [vmem:[#allocation5 + $0xb4] sm:$0xff]
    %v267 = vld [vmem:[#allocation5 + $0xbc] sm:$0xff]
    %v268 = vld [vmem:[#allocation5 + $0xc4] sm:$0xf]
    %v269 = vld [vmem:[#allocation5 + $0xc8] sm:$0xff]
    %v270 = vld [vmem:[#allocation5 + $0xd0] sm:$0xff]
    %v271 = vld [vmem:[#allocation5 + $0xd8] sm:$0xf]
    %v272 = vld [vmem:[#allocation5 + $0xdc] sm:$0xff]
    %v273 = vld [vmem:[#allocation5 + $0xe4] sm:$0xff]
    %v274 = vld [vmem:[#allocation5 + $0xec] sm:$0xf]
    %v275 = vld [vmem:[#allocation5 + $0xf0] sm:$0xff]
    %v276 = vld [vmem:[#allocation5 + $0xf8] sm:$0xff]
    %v277 = vld [vmem:[#allocation5 + $0x100] sm:$0xf]
    %v278 = vld [vmem:[#allocation5 + $0x104] sm:$0xff]
    %v279 = vld [vmem:[#allocation5 + $0x10c] sm:$0xff]
    %v280 = vld [vmem:[#allocation5 + $0x114] sm:$0xf]
    %v281 = vld [vmem:[#allocation5 + $0x118] sm:$0xff]
    %v282 = vld [vmem:[#allocation5 + $0x120] sm:$0xff]
    %v283 = vld [vmem:[#allocation5 + $0x128] sm:$0xf]
    %v284 = vld [vmem:[#allocation5 + $0x12c] sm:$0xff]
    %v285 = vld [vmem:[#allocation5 + $0x134] sm:$0xff]
    %v286 = vld [vmem:[#allocation5 + $0x13c] sm:$0xf]
    %v287 = vld [vmem:[#allocation5 + $0x140] sm:$0xff]
    %v288 = vld [vmem:[#allocation5 + $0x148] sm:$0xff]
    %v289 = vld [vmem:[#allocation5 + $0x150] sm:$0xf]
    %v290 = vld [vmem:[#allocation5 + $0x154] sm:$0xff]
    %v291 = vld [vmem:[#allocation5 + $0x15c] sm:$0xff]
    %v292 = vld [vmem:[#allocation5 + $0x164] sm:$0xf]
    %v293 = vld [vmem:[#allocation5 + $0x168] sm:$0xff]
    %v294 = vld [vmem:[#allocation5 + $0x170] sm:$0xff]
    %v295 = vld [vmem:[#allocation5 + $0x178] sm:$0xf]
    %v296 = vld [vmem:[#allocation5 + $0x17c] sm:$0xff]
    %v297 = vld [vmem:[#allocation5 + $0x184] sm:$0xff]
    %v298 = vld [vmem:[#allocation5 + $0x18c] sm:$0xf]
    %v299 = vld [vmem:[#allocation5 + $0x190] sm:$0xff]
    %v300 = vld [vmem:[#allocation5 + $0x198] sm:$0xff]
    %v301 = vld [vmem:[#allocation5 + $0x1a0] sm:$0xf]
    %v302 = vld [vmem:[#allocation5 + $0x1a4] sm:$0xff]
    %v303 = vld [vmem:[#allocation5 + $0x1ac] sm:$0xff]
    %v304 = vld [vmem:[#allocation5 + $0x1b4] sm:$0xf]
    %v305 = vld [vmem:[#allocation5 + $0x1b8] sm:$0xff]
    %v306 = vld [vmem:[#allocation5 + $0x1c0] sm:$0xff]
    %v307 = vld [vmem:[#allocation5 + $0x1c8] sm:$0xf]
    %v308 = vld [vmem:[#allocation5 + $0x1cc] sm:$0xff]
    %v309 = vld [vmem:[#allocation5 + $0x1d4] sm:$0xff]
    %v310 = vld [vmem:[#allocation5 + $0x1dc] sm:$0xf]
    %v311 = vld [vmem:[#allocation5 + $0x1e0] sm:$0xff]
    %v312 = vld [vmem:[#allocation5 + $0x1e8] sm:$0xff]
    %v313 = vld [vmem:[#allocation5 + $0x1f0] sm:$0xf]
    %v314 = vld [vmem:[#allocation5 + $0x1f4] sm:$0xff]
    %v315 = vld [vmem:[#allocation5 + $0x1fc] sm:$0xff]
    %v316 = vld [vmem:[#allocation5 + $0x204] sm:$0xf]
    %v317 = vld [vmem:[#allocation5 + $0x208] sm:$0xff]
    %v318 = vld [vmem:[#allocation5 + $0x210] sm:$0xff]
    %v319 = vld [vmem:[#allocation5 + $0x218] sm:$0xf]
    %v320 = vld [vmem:[#allocation5 + $0x21c] sm:$0xff]
    %v321 = vld [vmem:[#allocation5 + $0x224] sm:$0xff]
    %v322 = vld [vmem:[#allocation5 + $0x22c] sm:$0xf]
    %v323 = vld [vmem:[#allocation5 + $0x230] sm:$0xff]
    %v324 = vld [vmem:[#allocation5 + $0x238] sm:$0xff]
    %v325 = vld [vmem:[#allocation5 + $0x240] sm:$0xf]
    %v326 = vld [vmem:[#allocation5 + $0x244] sm:$0xff]
    %v327 = vld [vmem:[#allocation5 + $0x24c] sm:$0xff]
    %v328 = vld [vmem:[#allocation5 + $0x254] sm:$0xf]
    %v329 = vld [vmem:[#allocation5 + $0x258] sm:$0xff]
    %v330 = vld [vmem:[#allocation5 + $0x260] sm:$0xff]
    %v331 = vld [vmem:[#allocation5 + $0x268] sm:$0xf]
    %v332 = vld [vmem:[#allocation5 + $0x26c] sm:$0xff]
    %v333 = vld [vmem:[#allocation5 + $0x274] sm:$0xff]
    %v334 = vld [vmem:[#allocation5 + $0x27c] sm:$0xf]
    %v335 = vld [vmem:[#allocation5 + $0x280] sm:$0xff]
    %v336 = vld [vmem:[#allocation5 + $0x288] sm:$0xff]
    %v337 = vld [vmem:[#allocation5 + $0x290] sm:$0xf]
    %v338 = vld [vmem:[#allocation5 + $0x294] sm:$0xff]
    %v339 = vld [vmem:[#allocation5 + $0x29c] sm:$0xff]
    %v340 = vld [vmem:[#allocation5 + $0x2a4] sm:$0xf]
    %v341 = vld [vmem:[#allocation5 + $0x2a8] sm:$0xff]
    %v342 = vld [vmem:[#allocation5 + $0x2b0] sm:$0xff]
    %v343 = vld [vmem:[#allocation5 + $0x2b8] sm:$0xf]
    %v344 = vld [vmem:[#allocation5 + $0x2bc] sm:$0xff]
    %v345 = vld [vmem:[#allocation5 + $0x2c4] sm:$0xff]
    %v346 = vld [vmem:[#allocation5 + $0x2cc] sm:$0xf]
    %v347 = vld [vmem:[#allocation5 + $0x2d0] sm:$0xff]
    %v348 = vld [vmem:[#allocation5 + $0x2d8] sm:$0xff]
    %v349 = vld [vmem:[#allocation5 + $0x2e0] sm:$0xf]
    %v350 = vld [vmem:[#allocation5 + $0x2e4] sm:$0xff]
    %v351 = vld [vmem:[#allocation5 + $0x2ec] sm:$0xff]
    %v352 = vld [vmem:[#allocation5 + $0x2f4] sm:$0xf]
    %v353 = vld [vmem:[#allocation5 + $0x2f8] sm:$0xff]
    %v354 = vld [vmem:[#allocation5 + $0x300] sm:$0xff]
    %v355 = vld [vmem:[#allocation5 + $0x308] sm:$0xf]
    %v356 = vld [vmem:[#allocation5 + $0x30c] sm:$0xff]
    %v357 = vld [vmem:[#allocation5 + $0x314] sm:$0xff]
    %v358 = vld [vmem:[#allocation5 + $0x31c] sm:$0xf]
    %v359 = vld [vmem:[#allocation5 + $0x320] sm:$0xff]
    %v360 = vld [vmem:[#allocation5 + $0x328] sm:$0xff]
    %v361 = vld [vmem:[#allocation5 + $0x330] sm:$0xf]
    %v362 = vld [vmem:[#allocation5 + $0x334] sm:$0xff]
    %v363 = vld [vmem:[#allocation5 + $0x33c] sm:$0xff]
    %v364 = vld [vmem:[#allocation5 + $0x344] sm:$0xf]
    %v365 = vld [vmem:[#allocation5 + $0x348] sm:$0xff]
    %v366 = vld [vmem:[#allocation5 + $0x350] sm:$0xff]
    %v367 = vld [vmem:[#allocation5 + $0x358] sm:$0xf]
    %v368 = vld [vmem:[#allocation5 + $0x35c] sm:$0xff]
    %v369 = vld [vmem:[#allocation5 + $0x364] sm:$0xff]
    %v370 = vld [vmem:[#allocation5 + $0x36c] sm:$0xf]
    %v371 = vld [vmem:[#allocation5 + $0x370] sm:$0xff]
    %v372 = vld [vmem:[#allocation5 + $0x378] sm:$0xff]
    %v373 = vld [vmem:[#allocation5 + $0x380] sm:$0xf]
    %v374 = vld [vmem:[#allocation5 + $0x384] sm:$0xff]
    %v375 = vld [vmem:[#allocation5 + $0x38c] sm:$0xff]
    %v376 = vld [vmem:[#allocation5 + $0x394] sm:$0xf]
    %v377 = vld [vmem:[#allocation5 + $0x398] sm:$0xff]
    %v378 = vld [vmem:[#allocation5 + $0x3a0] sm:$0xff]
    %v379 = vld [vmem:[#allocation5 + $0x3a8] sm:$0xf]
    %v380 = vld [vmem:[#allocation5 + $0x3ac] sm:$0xff]
    %v381 = vld [vmem:[#allocation5 + $0x3b4] sm:$0xff]
    %v382 = vld [vmem:[#allocation5 + $0x3bc] sm:$0xf]
    %v383 = vld [vmem:[%s4] sm:$0x1f]
    %v385 = vlaneseq
    %v386 = vshrl.u32 %v385, 7
    %v387 = vsub.s32 0, %v386
    %v388 = vrot.slane %v383, %v387
    %v389 = vlaneseq
    %v390 = vshrl.u32 %v389, 7
    %v391 = vsub.s32 1, %v390
    %v392 = vrot.slane %v383, %v391
    %v393 = vlaneseq
    %v394 = vshrl.u32 %v393, 7
    %v395 = vsub.s32 2, %v394
    %v396 = vrot.slane %v383, %v395
    %v397 = vlaneseq
    %v398 = vshrl.u32 %v397, 7
    %v399 = vsub.s32 3, %v398
    %v400 = vrot.slane %v383, %v399
    %v401 = vlaneseq
    %v402 = vshrl.u32 %v401, 7
    %v403 = vsub.s32 4, %v402
    %v404 = vrot.slane %v383, %v403
    %v554 = vunpack.c.l.b16 %v239
    %v555 = vunpack.c.h.b16 %v239
    %v556 = vunpack.c.l.b16 %v240
    %v557 = vunpack.c.h.b16 %v240
    %v558 = vunpack.c.l.b16 %v241
    %v559 = vunpack.c.l.b16 %v242
    %v560 = vunpack.c.h.b16 %v242
    %v561 = vunpack.c.l.b16 %v243
    %v562 = vunpack.c.h.b16 %v243
    %v563 = vunpack.c.l.b16 %v244
    %v564 = vunpack.c.l.b16 %v245
    %v565 = vunpack.c.h.b16 %v245
    %v566 = vunpack.c.l.b16 %v246
    %v567 = vunpack.c.h.b16 %v246
    %v568 = vunpack.c.l.b16 %v247
    %v569 = vunpack.c.l.b16 %v248
    %v570 = vunpack.c.h.b16 %v248
    %v571 = vunpack.c.l.b16 %v249
    %v572 = vunpack.c.h.b16 %v249
    %v573 = vunpack.c.l.b16 %v250
    %v574 = vunpack.c.l.b16 %v251
    %v575 = vunpack.c.h.b16 %v251
    %v576 = vunpack.c.l.b16 %v252
    %v577 = vunpack.c.h.b16 %v252
    %v578 = vunpack.c.l.b16 %v253
    %v579 = vunpack.c.l.b16 %v254
    %v580 = vunpack.c.h.b16 %v254
    %v581 = vunpack.c.l.b16 %v255
    %v582 = vunpack.c.h.b16 %v255
    %v583 = vunpack.c.l.b16 %v256
    %v584 = vunpack.c.l.b16 %v257
    %v585 = vunpack.c.h.b16 %v257
    %v586 = vunpack.c.l.b16 %v258
    %v587 = vunpack.c.h.b16 %v258
    %v588 = vunpack.c.l.b16 %v259
    %v589 = vunpack.c.l.b16 %v260
    %v590 = vunpack.c.h.b16 %v260
    %v591 = vunpack.c.l.b16 %v261
    %v592 = vunpack.c.h.b16 %v261
    %v593 = vunpack.c.l.b16 %v262
    %v594 = vunpack.c.l.b16 %v263
    %v595 = vunpack.c.h.b16 %v263
    %v596 = vunpack.c.l.b16 %v264
    %v597 = vunpack.c.h.b16 %v264
    %v598 = vunpack.c.l.b16 %v265
    %v599 = vunpack.c.l.b16 %v266
    %v600 = vunpack.c.h.b16 %v266
    %v601 = vunpack.c.l.b16 %v267
    %v602 = vunpack.c.h.b16 %v267
    %v603 = vunpack.c.l.b16 %v268
    %v604 = vunpack.c.l.b16 %v269
    %v605 = vunpack.c.h.b16 %v269
    %v606 = vunpack.c.l.b16 %v270
    %v607 = vunpack.c.h.b16 %v270
    %v608 = vunpack.c.l.b16 %v271
    %v609 = vunpack.c.l.b16 %v272
    %v610 = vunpack.c.h.b16 %v272
    %v611 = vunpack.c.l.b16 %v273
    %v612 = vunpack.c.h.b16 %v273
    %v613 = vunpack.c.l.b16 %v274
    %v614 = vunpack.c.l.b16 %v275
    %v615 = vunpack.c.h.b16 %v275
    %v616 = vunpack.c.l.b16 %v276
    %v617 = vunpack.c.h.b16 %v276
    %v618 = vunpack.c.l.b16 %v277
    %v619 = vunpack.c.l.b16 %v278
    %v620 = vunpack.c.h.b16 %v278
    %v621 = vunpack.c.l.b16 %v279
    %v622 = vunpack.c.h.b16 %v279
    %v623 = vunpack.c.l.b16 %v280
    %v624 = vunpack.c.l.b16 %v281
    %v625 = vunpack.c.h.b16 %v281
    %v626 = vunpack.c.l.b16 %v282
    %v627 = vunpack.c.h.b16 %v282
    %v628 = vunpack.c.l.b16 %v283
    %v629 = vunpack.c.l.b16 %v284
    %v630 = vunpack.c.h.b16 %v284
    %v631 = vunpack.c.l.b16 %v285
    %v632 = vunpack.c.h.b16 %v285
    %v633 = vunpack.c.l.b16 %v286
    %v634 = vunpack.c.l.b16 %v287
    %v635 = vunpack.c.h.b16 %v287
    %v636 = vunpack.c.l.b16 %v288
    %v637 = vunpack.c.h.b16 %v288
    %v638 = vunpack.c.l.b16 %v289
    %v639 = vunpack.c.l.b16 %v290
    %v640 = vunpack.c.h.b16 %v290
    %v641 = vunpack.c.l.b16 %v291
    %v642 = vunpack.c.h.b16 %v291
    %v643 = vunpack.c.l.b16 %v292
    %v644 = vunpack.c.l.b16 %v293
    %v645 = vunpack.c.h.b16 %v293
    %v646 = vunpack.c.l.b16 %v294
    %v647 = vunpack.c.h.b16 %v294
    %v648 = vunpack.c.l.b16 %v295
    %v649 = vunpack.c.l.b16 %v296
    %v650 = vunpack.c.h.b16 %v296
    %v651 = vunpack.c.l.b16 %v297
    %v652 = vunpack.c.h.b16 %v297
    %v653 = vunpack.c.l.b16 %v298
    %v654 = vunpack.c.l.b16 %v299
    %v655 = vunpack.c.h.b16 %v299
    %v656 = vunpack.c.l.b16 %v300
    %v657 = vunpack.c.h.b16 %v300
    %v658 = vunpack.c.l.b16 %v301
    %v659 = vunpack.c.l.b16 %v302
    %v660 = vunpack.c.h.b16 %v302
    %v661 = vunpack.c.l.b16 %v303
    %v662 = vunpack.c.h.b16 %v303
    %v663 = vunpack.c.l.b16 %v304
    %v664 = vunpack.c.l.b16 %v305
    %v665 = vunpack.c.h.b16 %v305
    %v666 = vunpack.c.l.b16 %v306
    %v667 = vunpack.c.h.b16 %v306
    %v668 = vunpack.c.l.b16 %v307
    %v669 = vunpack.c.l.b16 %v308
    %v670 = vunpack.c.h.b16 %v308
    %v671 = vunpack.c.l.b16 %v309
    %v672 = vunpack.c.h.b16 %v309
    %v673 = vunpack.c.l.b16 %v310
    %v674 = vunpack.c.l.b16 %v311
    %v675 = vunpack.c.h.b16 %v311
    %v676 = vunpack.c.l.b16 %v312
    %v677 = vunpack.c.h.b16 %v312
    %v678 = vunpack.c.l.b16 %v313
    %v679 = vunpack.c.l.b16 %v314
    %v680 = vunpack.c.h.b16 %v314
    %v681 = vunpack.c.l.b16 %v315
    %v682 = vunpack.c.h.b16 %v315
    %v683 = vunpack.c.l.b16 %v316
    %v684 = vunpack.c.l.b16 %v317
    %v685 = vunpack.c.h.b16 %v317
    %v686 = vunpack.c.l.b16 %v318
    %v687 = vunpack.c.h.b16 %v318
    %v688 = vunpack.c.l.b16 %v319
    %v689 = vunpack.c.l.b16 %v320
    %v690 = vunpack.c.h.b16 %v320
    %v691 = vunpack.c.l.b16 %v321
    %v692 = vunpack.c.h.b16 %v321
    %v693 = vunpack.c.l.b16 %v322
    %v694 = vunpack.c.l.b16 %v323
    %v695 = vunpack.c.h.b16 %v323
    %v696 = vunpack.c.l.b16 %v324
    %v697 = vunpack.c.h.b16 %v324
    %v698 = vunpack.c.l.b16 %v325
    %v699 = vunpack.c.l.b16 %v326
    %v700 = vunpack.c.h.b16 %v326
    %v701 = vunpack.c.l.b16 %v327
    %v702 = vunpack.c.h.b16 %v327
    %v703 = vunpack.c.l.b16 %v328
    %v704 = vunpack.c.l.b16 %v329
    %v705 = vunpack.c.h.b16 %v329
    %v706 = vunpack.c.l.b16 %v330
    %v707 = vunpack.c.h.b16 %v330
    %v708 = vunpack.c.l.b16 %v331
    %v709 = vunpack.c.l.b16 %v332
    %v710 = vunpack.c.h.b16 %v332
    %v711 = vunpack.c.l.b16 %v333
    %v712 = vunpack.c.h.b16 %v333
    %v713 = vunpack.c.l.b16 %v334
    %v714 = vunpack.c.l.b16 %v335
    %v715 = vunpack.c.h.b16 %v335
    %v716 = vunpack.c.l.b16 %v336
    %v717 = vunpack.c.h.b16 %v336
    %v718 = vunpack.c.l.b16 %v337
    %v719 = vunpack.c.l.b16 %v338
    %v720 = vunpack.c.h.b16 %v338
    %v721 = vunpack.c.l.b16 %v339
    %v722 = vunpack.c.h.b16 %v339
    %v723 = vunpack.c.l.b16 %v340
    %v724 = vunpack.c.l.b16 %v341
    %v725 = vunpack.c.h.b16 %v341
    %v726 = vunpack.c.l.b16 %v342
    %v727 = vunpack.c.h.b16 %v342
    %v728 = vunpack.c.l.b16 %v343
    %v729 = vunpack.c.l.b16 %v344
    %v730 = vunpack.c.h.b16 %v344
    %v731 = vunpack.c.l.b16 %v345
    %v732 = vunpack.c.h.b16 %v345
    %v733 = vunpack.c.l.b16 %v346
    %v734 = vunpack.c.l.b16 %v347
    %v735 = vunpack.c.h.b16 %v347
    %v736 = vunpack.c.l.b16 %v348
    %v737 = vunpack.c.h.b16 %v348
    %v738 = vunpack.c.l.b16 %v349
    %v739 = vunpack.c.l.b16 %v350
    %v740 = vunpack.c.h.b16 %v350
    %v741 = vunpack.c.l.b16 %v351
    %v742 = vunpack.c.h.b16 %v351
    %v743 = vunpack.c.l.b16 %v352
    %v744 = vunpack.c.l.b16 %v353
    %v745 = vunpack.c.h.b16 %v353
    %v746 = vunpack.c.l.b16 %v354
    %v747 = vunpack.c.h.b16 %v354
    %v748 = vunpack.c.l.b16 %v355
    %v749 = vunpack.c.l.b16 %v356
    %v750 = vunpack.c.h.b16 %v356
    %v751 = vunpack.c.l.b16 %v357
    %v752 = vunpack.c.h.b16 %v357
    %v753 = vunpack.c.l.b16 %v358
    %v754 = vunpack.c.l.b16 %v359
    %v755 = vunpack.c.h.b16 %v359
    %v756 = vunpack.c.l.b16 %v360
    %v757 = vunpack.c.h.b16 %v360
    %v758 = vunpack.c.l.b16 %v361
    %v759 = vunpack.c.l.b16 %v362
    %v760 = vunpack.c.h.b16 %v362
    %v761 = vunpack.c.l.b16 %v363
    %v762 = vunpack.c.h.b16 %v363
    %v763 = vunpack.c.l.b16 %v364
    %v764 = vunpack.c.l.b16 %v365
    %v765 = vunpack.c.h.b16 %v365
    %v766 = vunpack.c.l.b16 %v366
    %v767 = vunpack.c.h.b16 %v366
    %v768 = vunpack.c.l.b16 %v367
    %v769 = vunpack.c.l.b16 %v368
    %v770 = vunpack.c.h.b16 %v368
    %v771 = vunpack.c.l.b16 %v369
    %v772 = vunpack.c.h.b16 %v369
    %v773 = vunpack.c.l.b16 %v370
    %v774 = vunpack.c.l.b16 %v371
    %v775 = vunpack.c.h.b16 %v371
    %v776 = vunpack.c.l.b16 %v372
    %v777 = vunpack.c.h.b16 %v372
    %v778 = vunpack.c.l.b16 %v373
    %v779 = vunpack.c.l.b16 %v374
    %v780 = vunpack.c.h.b16 %v374
    %v781 = vunpack.c.l.b16 %v375
    %v782 = vunpack.c.h.b16 %v375
    %v783 = vunpack.c.l.b16 %v376
    %v784 = vunpack.c.l.b16 %v377
    %v785 = vunpack.c.h.b16 %v377
    %v786 = vunpack.c.l.b16 %v378
    %v787 = vunpack.c.h.b16 %v378
    %v788 = vunpack.c.l.b16 %v379
    %v789 = vunpack.c.l.b16 %v380
    %v790 = vunpack.c.h.b16 %v380
    %v791 = vunpack.c.l.b16 %v381
    %v792 = vunpack.c.h.b16 %v381
    %v793 = vunpack.c.l.b16 %v382
    %v794 = vpack.c.b16 %v559, %v554
    %v795 = vpack.c.b16 %v560, %v555
    %v796 = vpack.c.b16 %v561, %v556
    %v797 = vpack.c.b16 %v562, %v557
    %v798 = vpack.c.b16 %v563, %v558
    %v799 = vpack.c.b16 %v569, %v564
    %v800 = vpack.c.b16 %v570, %v565
    %v801 = vpack.c.b16 %v571, %v566
    %v802 = vpack.c.b16 %v572, %v567
    %v803 = vpack.c.b16 %v573, %v568
    %v804 = vpack.c.b16 %v579, %v574
    %v805 = vpack.c.b16 %v580, %v575
    %v806 = vpack.c.b16 %v581, %v576
    %v807 = vpack.c.b16 %v582, %v577
    %v808 = vpack.c.b16 %v583, %v578
    %v809 = vpack.c.b16 %v589, %v584
    %v810 = vpack.c.b16 %v590, %v585
    %v811 = vpack.c.b16 %v591, %v586
    %v812 = vpack.c.b16 %v592, %v587
    %v813 = vpack.c.b16 %v593, %v588
    %v814 = vpack.c.b16 %v599, %v594
    %v815 = vpack.c.b16 %v600, %v595
    %v816 = vpack.c.b16 %v601, %v596
    %v817 = vpack.c.b16 %v602, %v597
    %v818 = vpack.c.b16 %v603, %v598
    %v819 = vpack.c.b16 %v609, %v604
    %v820 = vpack.c.b16 %v610, %v605
    %v821 = vpack.c.b16 %v611, %v606
    %v822 = vpack.c.b16 %v612, %v607
    %v823 = vpack.c.b16 %v613, %v608
    %v824 = vpack.c.b16 %v619, %v614
    %v825 = vpack.c.b16 %v620, %v615
    %v826 = vpack.c.b16 %v621, %v616
    %v827 = vpack.c.b16 %v622, %v617
    %v828 = vpack.c.b16 %v623, %v618
    %v829 = vpack.c.b16 %v629, %v624
    %v830 = vpack.c.b16 %v630, %v625
    %v831 = vpack.c.b16 %v631, %v626
    %v832 = vpack.c.b16 %v632, %v627
    %v833 = vpack.c.b16 %v633, %v628
    %v834 = vpack.c.b16 %v639, %v634
    %v835 = vpack.c.b16 %v640, %v635
    %v836 = vpack.c.b16 %v641, %v636
    %v837 = vpack.c.b16 %v642, %v637
    %v838 = vpack.c.b16 %v643, %v638
    %v839 = vpack.c.b16 %v649, %v644
    %v840 = vpack.c.b16 %v650, %v645
    %v841 = vpack.c.b16 %v651, %v646
    %v842 = vpack.c.b16 %v652, %v647
    %v843 = vpack.c.b16 %v653, %v648
    %v844 = vpack.c.b16 %v659, %v654
    %v845 = vpack.c.b16 %v660, %v655
    %v846 = vpack.c.b16 %v661, %v656
    %v847 = vpack.c.b16 %v662, %v657
    %v848 = vpack.c.b16 %v663, %v658
    %v849 = vpack.c.b16 %v669, %v664
    %v850 = vpack.c.b16 %v670, %v665
    %v851 = vpack.c.b16 %v671, %v666
    %v852 = vpack.c.b16 %v672, %v667
    %v853 = vpack.c.b16 %v673, %v668
    %v854 = vpack.c.b16 %v679, %v674
    %v855 = vpack.c.b16 %v680, %v675
    %v856 = vpack.c.b16 %v681, %v676
    %v857 = vpack.c.b16 %v682, %v677
    %v858 = vpack.c.b16 %v683, %v678
    %v859 = vpack.c.b16 %v689, %v684
    %v860 = vpack.c.b16 %v690, %v685
    %v861 = vpack.c.b16 %v691, %v686
    %v862 = vpack.c.b16 %v692, %v687
    %v863 = vpack.c.b16 %v693, %v688
    %v864 = vpack.c.b16 %v699, %v694
    %v865 = vpack.c.b16 %v700, %v695
    %v866 = vpack.c.b16 %v701, %v696
    %v867 = vpack.c.b16 %v702, %v697
    %v868 = vpack.c.b16 %v703, %v698
    %v869 = vpack.c.b16 %v709, %v704
    %v870 = vpack.c.b16 %v710, %v705
    %v871 = vpack.c.b16 %v711, %v706
    %v872 = vpack.c.b16 %v712, %v707
    %v873 = vpack.c.b16 %v713, %v708
    %v874 = vpack.c.b16 %v719, %v714
    %v875 = vpack.c.b16 %v720, %v715
    %v876 = vpack.c.b16 %v721, %v716
    %v877 = vpack.c.b16 %v722, %v717
    %v878 = vpack.c.b16 %v723, %v718
    %v879 = vpack.c.b16 %v729, %v724
    %v880 = vpack.c.b16 %v730, %v725
    %v881 = vpack.c.b16 %v731, %v726
    %v882 = vpack.c.b16 %v732, %v727
    %v883 = vpack.c.b16 %v733, %v728
    %v884 = vpack.c.b16 %v739, %v734
    %v885 = vpack.c.b16 %v740, %v735
    %v886 = vpack.c.b16 %v741, %v736
    %v887 = vpack.c.b16 %v742, %v737
    %v888 = vpack.c.b16 %v743, %v738
    %v889 = vpack.c.b16 %v749, %v744
    %v890 = vpack.c.b16 %v750, %v745
    %v891 = vpack.c.b16 %v751, %v746
    %v892 = vpack.c.b16 %v752, %v747
    %v893 = vpack.c.b16 %v753, %v748
    %v894 = vpack.c.b16 %v759, %v754
    %v895 = vpack.c.b16 %v760, %v755
    %v896 = vpack.c.b16 %v761, %v756
    %v897 = vpack.c.b16 %v762, %v757
    %v898 = vpack.c.b16 %v763, %v758
    %v899 = vpack.c.b16 %v769, %v764
    %v900 = vpack.c.b16 %v770, %v765
    %v901 = vpack.c.b16 %v771, %v766
    %v902 = vpack.c.b16 %v772, %v767
    %v903 = vpack.c.b16 %v773, %v768
    %v904 = vpack.c.b16 %v779, %v774
    %v905 = vpack.c.b16 %v780, %v775
    %v906 = vpack.c.b16 %v781, %v776
    %v907 = vpack.c.b16 %v782, %v777
    %v908 = vpack.c.b16 %v783, %v778
    %v909 = vpack.c.b16 %v789, %v784
    %v910 = vpack.c.b16 %v790, %v785
    %v911 = vpack.c.b16 %v791, %v786
    %v912 = vpack.c.b16 %v792, %v787
    %v913 = vpack.c.b16 %v793, %v788
    %1034 = vmatprep.subr.bf16.mxu0 %v830
    %1035 = vmatpush1.bf16.msra.mxu0 %v829
    %1036 = vmatprep.subr.bf16.mxu0 %v825
    %1037 = vmatpush1.bf16.msra.mxu0 %v824
    %1038 = vmatprep.subr.bf16.mxu0 %v820
    %1039 = vmatpush1.bf16.msra.mxu0 %v819
    %1040 = vmatprep.subr.bf16.mxu0 %v815
    %1041 = vmatpush1.bf16.msra.mxu0 %v814
    %1042 = vmatprep.subr.bf16.mxu0 %v810
    %1043 = vmatpush1.bf16.msra.mxu0 %v809
    %1044 = vmatprep.subr.bf16.mxu0 %v805
    %1045 = vmatpush1.bf16.msra.mxu0 %v804
    %1046 = vmatprep.subr.bf16.mxu0 %v800
    %1047 = vmatpush1.bf16.msra.mxu0 %v799
    %1048 = vmatprep.subr.bf16.mxu0 %v795
    %1049 = vmatpush1.bf16.msra.mxu0 %v794
    %1050 = vmatprep.subr.bf16.mxu0 %v870
    %1051 = vmatpush2.bf16.msra.mxu0 %v869
    %1052 = vmatprep.subr.bf16.mxu0 %v865
    %1053 = vmatpush2.bf16.msra.mxu0 %v864
    %1054 = vmatprep.subr.bf16.mxu0 %v860
    %1055 = vmatpush2.bf16.msra.mxu0 %v859
    %1056 = vmatprep.subr.bf16.mxu0 %v855
    %1057 = vmatpush2.bf16.msra.mxu0 %v854
    %1058 = vmatprep.subr.bf16.mxu0 %v850
    %1059 = vmatpush2.bf16.msra.mxu0 %v849
    %1060 = vmatprep.subr.bf16.mxu0 %v845
    %1061 = vmatpush2.bf16.msra.mxu0 %v844
    %1062 = vmatprep.subr.bf16.mxu0 %v840
    %1063 = vmatpush2.bf16.msra.mxu0 %v839
    %1064 = vmatprep.subr.bf16.mxu0 %v835
    %1065 = vmatpush2.bf16.msra.mxu0 %v834
    %1066 = vmatprep.mubr.bf16.mxu0 %v237
    %1067 = vmatmul.mubr.bf16.gmra.mxu0 %v236
    %v1068 = vpop.f32.mrf.mxu0
    %v1069 = vadd.f32 %v388, %v1068
    %v1070 = vpop.f32.mrf.mxu0
    %v1071 = vadd.f32 %v392, %v1070
    %v1072 = vpop.f32.mrf.mxu0
    %v1073 = vpop.f32.mrf.mxu0
    %1074 = vdwg.mxu0
    %1075 = vmatprep.subr.bf16.mxu0 %v910
    %1076 = vmatpush1.bf16.msra.mxu0 %v909
    %1077 = vmatprep.subr.bf16.mxu0 %v905
    %1078 = vmatpush1.bf16.msra.mxu0 %v904
    %1079 = vmatprep.subr.bf16.mxu0 %v900
    %1080 = vmatpush1.bf16.msra.mxu0 %v899
    %1081 = vmatprep.subr.bf16.mxu0 %v895
    %1082 = vmatpush1.bf16.msra.mxu0 %v894
    %1083 = vmatprep.subr.bf16.mxu0 %v890
    %1084 = vmatpush1.bf16.msra.mxu0 %v889
    %1085 = vmatprep.subr.bf16.mxu0 %v885
    %1086 = vmatpush1.bf16.msra.mxu0 %v884
    %1087 = vmatprep.subr.bf16.mxu0 %v880
    %1088 = vmatpush1.bf16.msra.mxu0 %v879
    %1089 = vmatprep.subr.bf16.mxu0 %v875
    %1090 = vmatpush1.bf16.msra.mxu0 %v874
    %1091 = vmatprep.subr.bf16.mxu0 0
    %1092 = vmatpush2.bf16.msra.mxu0 0
    %1093 = vmatprep.subr.bf16.mxu0 0
    %1094 = vmatpush2.bf16.msra.mxu0 0
    %1095 = vmatprep.subr.bf16.mxu0 0
    %1096 = vmatpush2.bf16.msra.mxu0 0
    %1097 = vmatprep.subr.bf16.mxu0 0
    %1098 = vmatpush2.bf16.msra.mxu0 0
    %1099 = vmatprep.subr.bf16.mxu0 0
    %1100 = vmatpush2.bf16.msra.mxu0 0
    %1101 = vmatprep.subr.bf16.mxu0 0
    %1102 = vmatpush2.bf16.msra.mxu0 0
    %1103 = vmatprep.subr.bf16.mxu0 0
    %1104 = vmatpush2.bf16.msra.mxu0 0
    %1105 = vmatprep.subr.bf16.mxu0 0
    %1106 = vmatpush2.bf16.msra.mxu0 0
    %1107 = vmatprep.mubr.bf16.mxu0 0
    %1108 = vmatmul.mubr.bf16.gmra.mxu0 %v238
    %v1109 = vpop.f32.mrf.mxu0
    %v1110 = vadd.f32 %v1069, %v1109
    %v1111 = vpop.f32.mrf.mxu0
    %v1112 = vadd.f32 %v1071, %v1111
    %v1113 = vpop.f32.mrf.mxu0
    %v1114 = vpop.f32.mrf.mxu0
    %1115 = vdwg.mxu0
    %1116 = vmatprep.subr.bf16.mxu0 %v832
    %1117 = vmatpush1.bf16.msra.mxu0 %v831
    %1118 = vmatprep.subr.bf16.mxu0 %v827
    %1119 = vmatpush1.bf16.msra.mxu0 %v826
    %1120 = vmatprep.subr.bf16.mxu0 %v822
    %1121 = vmatpush1.bf16.msra.mxu0 %v821
    %1122 = vmatprep.subr.bf16.mxu0 %v817
    %1123 = vmatpush1.bf16.msra.mxu0 %v816
    %1124 = vmatprep.subr.bf16.mxu0 %v812
    %1125 = vmatpush1.bf16.msra.mxu0 %v811
    %1126 = vmatprep.subr.bf16.mxu0 %v807
    %1127 = vmatpush1.bf16.msra.mxu0 %v806
    %1128 = vmatprep.subr.bf16.mxu0 %v802
    %1129 = vmatpush1.bf16.msra.mxu0 %v801
    %1130 = vmatprep.subr.bf16.mxu0 %v797
    %1131 = vmatpush1.bf16.msra.mxu0 %v796
    %1132 = vmatprep.subr.bf16.mxu0 %v872
    %1133 = vmatpush2.bf16.msra.mxu0 %v871
    %1134 = vmatprep.subr.bf16.mxu0 %v867
    %1135 = vmatpush2.bf16.msra.mxu0 %v866
    %1136 = vmatprep.subr.bf16.mxu0 %v862
    %1137 = vmatpush2.bf16.msra.mxu0 %v861
    %1138 = vmatprep.subr.bf16.mxu0 %v857
    %1139 = vmatpush2.bf16.msra.mxu0 %v856
    %1140 = vmatprep.subr.bf16.mxu0 %v852
    %1141 = vmatpush2.bf16.msra.mxu0 %v851
    %1142 = vmatprep.subr.bf16.mxu0 %v847
    %1143 = vmatpush2.bf16.msra.mxu0 %v846
    %1144 = vmatprep.subr.bf16.mxu0 %v842
    %1145 = vmatpush2.bf16.msra.mxu0 %v841
    %1146 = vmatprep.subr.bf16.mxu0 %v837
    %1147 = vmatpush2.bf16.msra.mxu0 %v836
    %1148 = vmatprep.mubr.bf16.mxu0 %v237
    %1149 = vmatmul.mubr.bf16.gmra.mxu0 %v236
    %v1150 = vpop.f32.mrf.mxu0
    %v1151 = vadd.f32 %v396, %v1150
    %v1152 = vpop.f32.mrf.mxu0
    %v1153 = vadd.f32 %v400, %v1152
    %v1154 = vpop.f32.mrf.mxu0
    %v1155 = vpop.f32.mrf.mxu0
    %1156 = vdwg.mxu0
    %1157 = vmatprep.subr.bf16.mxu0 %v912
    %1158 = vmatpush1.bf16.msra.mxu0 %v911
    %1159 = vmatprep.subr.bf16.mxu0 %v907
    %1160 = vmatpush1.bf16.msra.mxu0 %v906
    %1161 = vmatprep.subr.bf16.mxu0 %v902
    %1162 = vmatpush1.bf16.msra.mxu0 %v901
    %1163 = vmatprep.subr.bf16.mxu0 %v897
    %1164 = vmatpush1.bf16.msra.mxu0 %v896
    %1165 = vmatprep.subr.bf16.mxu0 %v892
    %1166 = vmatpush1.bf16.msra.mxu0 %v891
    %1167 = vmatprep.subr.bf16.mxu0 %v887
    %1168 = vmatpush1.bf16.msra.mxu0 %v886
    %1169 = vmatprep.subr.bf16.mxu0 %v882
    %1170 = vmatpush1.bf16.msra.mxu0 %v881
    %1171 = vmatprep.subr.bf16.mxu0 %v877
    %1172 = vmatpush1.bf16.msra.mxu0 %v876
    %1173 = vmatprep.subr.bf16.mxu0 0
    %1174 = vmatpush2.bf16.msra.mxu0 0
    %1175 = vmatprep.subr.bf16.mxu0 0
    %1176 = vmatpush2.bf16.msra.mxu0 0
    %1177 = vmatprep.subr.bf16.mxu0 0
    %1178 = vmatpush2.bf16.msra.mxu0 0
    %1179 = vmatprep.subr.bf16.mxu0 0
    %1180 = vmatpush2.bf16.msra.mxu0 0
    %1181 = vmatprep.subr.bf16.mxu0 0
    %1182 = vmatpush2.bf16.msra.mxu0 0
    %1183 = vmatprep.subr.bf16.mxu0 0
    %1184 = vmatpush2.bf16.msra.mxu0 0
    %1185 = vmatprep.subr.bf16.mxu0 0
    %1186 = vmatpush2.bf16.msra.mxu0 0
    %1187 = vmatprep.subr.bf16.mxu0 0
    %1188 = vmatpush2.bf16.msra.mxu0 0
    %1189 = vmatprep.mubr.bf16.mxu0 0
    %1190 = vmatmul.mubr.bf16.gmra.mxu0 %v238
    %v1191 = vpop.f32.mrf.mxu0
    %v1192 = vadd.f32 %v1151, %v1191
    %v1193 = vpop.f32.mrf.mxu0
    %v1194 = vadd.f32 %v1153, %v1193
    %v1195 = vpop.f32.mrf.mxu0
    %v1196 = vpop.f32.mrf.mxu0
    %1197 = vdwg.mxu0
    %1198 = vmatprep.subr.bf16.mxu0 0
    %1199 = vmatpush1.bf16.msra.mxu0 %v833
    %1200 = vmatprep.subr.bf16.mxu0 0
    %1201 = vmatpush1.bf16.msra.mxu0 %v828
    %1202 = vmatprep.subr.bf16.mxu0 0
    %1203 = vmatpush1.bf16.msra.mxu0 %v823
    %1204 = vmatprep.subr.bf16.mxu0 0
    %1205 = vmatpush1.bf16.msra.mxu0 %v818
    %1206 = vmatprep.subr.bf16.mxu0 0
    %1207 = vmatpush1.bf16.msra.mxu0 %v813
    %1208 = vmatprep.subr.bf16.mxu0 0
    %1209 = vmatpush1.bf16.msra.mxu0 %v808
    %1210 = vmatprep.subr.bf16.mxu0 0
    %1211 = vmatpush1.bf16.msra.mxu0 %v803
    %1212 = vmatprep.subr.bf16.mxu0 0
    %1213 = vmatpush1.bf16.msra.mxu0 %v798
    %1214 = vmatprep.subr.bf16.mxu0 0
    %1215 = vmatpush2.bf16.msra.mxu0 %v873
    %1216 = vmatprep.subr.bf16.mxu0 0
    %1217 = vmatpush2.bf16.msra.mxu0 %v868
    %1218 = vmatprep.subr.bf16.mxu0 0
    %1219 = vmatpush2.bf16.msra.mxu0 %v863
    %1220 = vmatprep.subr.bf16.mxu0 0
    %1221 = vmatpush2.bf16.msra.mxu0 %v858
    %1222 = vmatprep.subr.bf16.mxu0 0
    %1223 = vmatpush2.bf16.msra.mxu0 %v853
    %1224 = vmatprep.subr.bf16.mxu0 0
    %1225 = vmatpush2.bf16.msra.mxu0 %v848
    %1226 = vmatprep.subr.bf16.mxu0 0
    %1227 = vmatpush2.bf16.msra.mxu0 %v843
    %1228 = vmatprep.subr.bf16.mxu0 0
    %1229 = vmatpush2.bf16.msra.mxu0 %v838
    %1230 = vmatprep.mubr.bf16.mxu0 %v237
    %1231 = vmatmul.mubr.bf16.gmra.mxu0 %v236
    %v1232 = vpop.f32.mrf.mxu0
    %v1233 = vadd.f32 %v404, %v1232
    %v1234 = vpop.f32.mrf.mxu0
    %v1235 = vpop.f32.mrf.mxu0
    %v1236 = vpop.f32.mrf.mxu0
    %1237 = vdwg.mxu0
    %1238 = vmatprep.subr.bf16.mxu0 0
    %1239 = vmatpush1.bf16.msra.mxu0 %v913
    %1240 = vmatprep.subr.bf16.mxu0 0
    %1241 = vmatpush1.bf16.msra.mxu0 %v908
    %1242 = vmatprep.subr.bf16.mxu0 0
    %1243 = vmatpush1.bf16.msra.mxu0 %v903
    %1244 = vmatprep.subr.bf16.mxu0 0
    %1245 = vmatpush1.bf16.msra.mxu0 %v898
    %1246 = vmatprep.subr.bf16.mxu0 0
    %1247 = vmatpush1.bf16.msra.mxu0 %v893
    %1248 = vmatprep.subr.bf16.mxu0 0
    %1249 = vmatpush1.bf16.msra.mxu0 %v888
    %1250 = vmatprep.subr.bf16.mxu0 0
    %1251 = vmatpush1.bf16.msra.mxu0 %v883
    %1252 = vmatprep.subr.bf16.mxu0 0
    %1253 = vmatpush1.bf16.msra.mxu0 %v878
    %1254 = vmatprep.subr.bf16.mxu0 0
    %1255 = vmatpush2.bf16.msra.mxu0 0
    %1256 = vmatprep.subr.bf16.mxu0 0
    %1257 = vmatpush2.bf16.msra.mxu0 0
    %1258 = vmatprep.subr.bf16.mxu0 0
    %1259 = vmatpush2.bf16.msra.mxu0 0
    %1260 = vmatprep.subr.bf16.mxu0 0
    %1261 = vmatpush2.bf16.msra.mxu0 0
    %1262 = vmatprep.subr.bf16.mxu0 0
    %1263 = vmatpush2.bf16.msra.mxu0 0
    %1264 = vmatprep.subr.bf16.mxu0 0
    %1265 = vmatpush2.bf16.msra.mxu0 0
    %1266 = vmatprep.subr.bf16.mxu0 0
    %1267 = vmatpush2.bf16.msra.mxu0 0
    %1268 = vmatprep.subr.bf16.mxu0 0
    %1269 = vmatpush2.bf16.msra.mxu0 0
    %1270 = vmatprep.mubr.bf16.mxu0 0
    %1271 = vmatmul.mubr.bf16.gmra.mxu0 %v238
    %v1272 = vpop.f32.mrf.mxu0
    %v1273 = vadd.f32 %v1233, %v1272
    %v1274 = vpop.f32.mrf.mxu0
    %v1275 = vpop.f32.mrf.mxu0
    %v1276 = vpop.f32.mrf.mxu0
    %1277 = vdwg.mxu0
    %v1278 = vmax.f32 %v1110, 0.0
    %v1279 = vmax.f32 %v1112, 0.0
    %v1280 = vmax.f32 %v1192, 0.0
    %v1281 = vmax.f32 %v1194, 0.0
    %v1282 = vmax.f32 %v1273, 0.0
    %v1283 = vpack.c.bf16 %v1278, %v1278
    %v1284 = vpack.c.bf16 %v1279, %v1279
    %v1285 = vpack.c.bf16 %v1280, %v1280
    %v1286 = vpack.c.bf16 %v1281, %v1281
    %v1287 = vpack.c.bf16 %v1282, %v1282
    %v1288 = vld [vmem:[#allocation7] sm:$0xf]
    %v1289 = vld [vmem:[#allocation7 + $0x4] sm:$0xf]
    %v1290 = vld [vmem:[#allocation7 + $0x8] sm:$0xf]
    %v1291 = vld [vmem:[#allocation7 + $0xc] sm:$0xf]
    %v1292 = vld [vmem:[#allocation7 + $0x10] sm:$0xf]
    %v1293 = vld [vmem:[#allocation7 + $0x14] sm:$0xf]
    %v1294 = vld [vmem:[#allocation7 + $0x18] sm:$0xf]
    %v1295 = vld [vmem:[#allocation7 + $0x1c] sm:$0xf]
    %v1296 = vld [vmem:[#allocation7 + $0x20] sm:$0xf]
    %v1297 = vld [vmem:[#allocation7 + $0x24] sm:$0xf]
    %v1298 = vld [vmem:[#allocation7 + $0x28] sm:$0xf]
    %v1299 = vld [vmem:[#allocation7 + $0x2c] sm:$0xf]
    %v1300 = vld [vmem:[#allocation7 + $0x30] sm:$0xf]
    %v1301 = vld [vmem:[#allocation7 + $0x34] sm:$0xf]
    %v1302 = vld [vmem:[#allocation7 + $0x38] sm:$0xf]
    %v1303 = vld [vmem:[#allocation7 + $0x3c] sm:$0xf]
    %v1304 = vld [vmem:[#allocation7 + $0x40] sm:$0xf]
    %v1305 = vld [vmem:[#allocation7 + $0x44] sm:$0xf]
    %v1306 = vld [vmem:[#allocation7 + $0x48] sm:$0xf]
    %v1307 = vld [vmem:[#allocation7 + $0x4c] sm:$0xf]
    %v1308 = vld [vmem:[#allocation7 + $0x50] sm:$0xf]
    %v1309 = vld [vmem:[#allocation7 + $0x54] sm:$0xf]
    %v1310 = vld [vmem:[#allocation7 + $0x58] sm:$0xf]
    %v1311 = vld [vmem:[#allocation7 + $0x5c] sm:$0xf]
    %v1312 = vld [vmem:[#allocation7 + $0x60] sm:$0xf]
    %v1313 = vld [vmem:[#allocation7 + $0x64] sm:$0xf]
    %v1314 = vld [vmem:[#allocation7 + $0x68] sm:$0xf]
    %v1315 = vld [vmem:[#allocation7 + $0x6c] sm:$0xf]
    %v1316 = vld [vmem:[#allocation7 + $0x70] sm:$0xf]
    %v1317 = vld [vmem:[#allocation7 + $0x74] sm:$0xf]
    %v1318 = vld [vmem:[#allocation7 + $0x78] sm:$0xf]
    %v1319 = vld [vmem:[#allocation7 + $0x7c] sm:$0xf]
    %v1320 = vld [vmem:[#allocation7 + $0x80] sm:$0xf]
    %v1321 = vld [vmem:[#allocation7 + $0x84] sm:$0xf]
    %v1322 = vld [vmem:[#allocation7 + $0x88] sm:$0xf]
    %v1323 = vld [vmem:[#allocation7 + $0x8c] sm:$0xf]
    %v1324 = vld [vmem:[#allocation7 + $0x90] sm:$0xf]
    %v1325 = vld [vmem:[#allocation7 + $0x94] sm:$0xf]
    %v1326 = vld [vmem:[#allocation7 + $0x98] sm:$0xf]
    %v1327 = vld [vmem:[#allocation7 + $0x9c] sm:$0xf]
    %v1328 = vld [vmem:[#allocation7 + $0xa0] sm:$0xf]
    %v1329 = vld [vmem:[#allocation7 + $0xa4] sm:$0xf]
    %v1330 = vld [vmem:[#allocation7 + $0xa8] sm:$0xf]
    %v1331 = vld [vmem:[#allocation7 + $0xac] sm:$0xf]
    %v1332 = vld [vmem:[#allocation7 + $0xb0] sm:$0xf]
    %v1333 = vld [vmem:[#allocation7 + $0xb4] sm:$0xf]
    %v1334 = vld [vmem:[#allocation7 + $0xb8] sm:$0xf]
    %v1335 = vld [vmem:[#allocation7 + $0xbc] sm:$0xf]
    %v1336 = vld [vmem:[#allocation7 + $0xc0] sm:$0xf]
    %v1337 = vld [vmem:[#allocation7 + $0xc4] sm:$0xf]
    %v1338 = vld [vmem:[#allocation7 + $0xc8] sm:$0xf]
    %v1339 = vld [vmem:[#allocation7 + $0xcc] sm:$0xf]
    %v1340 = vld [vmem:[#allocation7 + $0xd0] sm:$0xf]
    %v1341 = vld [vmem:[#allocation7 + $0xd4] sm:$0xf]
    %v1342 = vld [vmem:[#allocation7 + $0xd8] sm:$0xf]
    %v1343 = vld [vmem:[#allocation7 + $0xdc] sm:$0xf]
    %v1344 = vld [vmem:[#allocation7 + $0xe0] sm:$0xf]
    %v1345 = vld [vmem:[#allocation7 + $0xe4] sm:$0xf]
    %v1346 = vld [vmem:[#allocation7 + $0xe8] sm:$0xf]
    %v1347 = vld [vmem:[#allocation7 + $0xec] sm:$0xf]
    %v1348 = vld [vmem:[#allocation7 + $0xf0] sm:$0xf]
    %v1349 = vld [vmem:[#allocation7 + $0xf4] sm:$0xf]
    %v1350 = vld [vmem:[#allocation7 + $0xf8] sm:$0xf]
    %v1351 = vld [vmem:[#allocation7 + $0xfc] sm:$0xf]
    %v1352 = vld [vmem:[#allocation7 + $0x100] sm:$0xf]
    %v1353 = vld [vmem:[#allocation7 + $0x104] sm:$0xf]
    %v1354 = vld [vmem:[#allocation7 + $0x108] sm:$0xf]
    %v1355 = vld [vmem:[#allocation7 + $0x10c] sm:$0xf]
    %v1356 = vld [vmem:[#allocation7 + $0x110] sm:$0xf]
    %v1357 = vld [vmem:[#allocation7 + $0x114] sm:$0xf]
    %v1358 = vld [vmem:[#allocation7 + $0x118] sm:$0xf]
    %v1359 = vld [vmem:[#allocation7 + $0x11c] sm:$0xf]
    %v1360 = vld [vmem:[#allocation7 + $0x120] sm:$0xf]
    %v1361 = vld [vmem:[#allocation7 + $0x124] sm:$0xf]
    %v1362 = vld [vmem:[#allocation7 + $0x128] sm:$0xf]
    %v1363 = vld [vmem:[#allocation7 + $0x12c] sm:$0xf]
    %v1364 = vld [vmem:[#allocation7 + $0x130] sm:$0xf]
    %v1365 = vld [vmem:[#allocation7 + $0x134] sm:$0xf]
    %v1366 = vld [vmem:[#allocation7 + $0x138] sm:$0xf]
    %v1367 = vld [vmem:[#allocation7 + $0x13c] sm:$0xf]
    %v1368 = vld [vmem:[%s6] sm:$0x1]
    %v1370 = vlaneseq
    %v1371 = vshrl.u32 %v1370, 7
    %v1372 = vsub.s32 0, %v1371
    %v1373 = vrot.slane %v1368, %v1372
    %v1455 = vunpack.c.l.b16 %v1288
    %v1456 = vunpack.c.l.b16 %v1289
    %v1457 = vunpack.c.l.b16 %v1290
    %v1458 = vunpack.c.l.b16 %v1291
    %v1459 = vunpack.c.l.b16 %v1292
    %v1460 = vunpack.c.l.b16 %v1293
    %v1461 = vunpack.c.l.b16 %v1294
    %v1462 = vunpack.c.l.b16 %v1295
    %v1463 = vunpack.c.l.b16 %v1296
    %v1464 = vunpack.c.l.b16 %v1297
    %v1465 = vunpack.c.l.b16 %v1298
    %v1466 = vunpack.c.l.b16 %v1299
    %v1467 = vunpack.c.l.b16 %v1300
    %v1468 = vunpack.c.l.b16 %v1301
    %v1469 = vunpack.c.l.b16 %v1302
    %v1470 = vunpack.c.l.b16 %v1303
    %v1471 = vunpack.c.l.b16 %v1304
    %v1472 = vunpack.c.l.b16 %v1305
    %v1473 = vunpack.c.l.b16 %v1306
    %v1474 = vunpack.c.l.b16 %v1307
    %v1475 = vunpack.c.l.b16 %v1308
    %v1476 = vunpack.c.l.b16 %v1309
    %v1477 = vunpack.c.l.b16 %v1310
    %v1478 = vunpack.c.l.b16 %v1311
    %v1479 = vunpack.c.l.b16 %v1312
    %v1480 = vunpack.c.l.b16 %v1313
    %v1481 = vunpack.c.l.b16 %v1314
    %v1482 = vunpack.c.l.b16 %v1315
    %v1483 = vunpack.c.l.b16 %v1316
    %v1484 = vunpack.c.l.b16 %v1317
    %v1485 = vunpack.c.l.b16 %v1318
    %v1486 = vunpack.c.l.b16 %v1319
    %v1487 = vunpack.c.l.b16 %v1320
    %v1488 = vunpack.c.l.b16 %v1321
    %v1489 = vunpack.c.l.b16 %v1322
    %v1490 = vunpack.c.l.b16 %v1323
    %v1491 = vunpack.c.l.b16 %v1324
    %v1492 = vunpack.c.l.b16 %v1325
    %v1493 = vunpack.c.l.b16 %v1326
    %v1494 = vunpack.c.l.b16 %v1327
    %v1495 = vunpack.c.l.b16 %v1328
    %v1496 = vunpack.c.l.b16 %v1329
    %v1497 = vunpack.c.l.b16 %v1330
    %v1498 = vunpack.c.l.b16 %v1331
    %v1499 = vunpack.c.l.b16 %v1332
    %v1500 = vunpack.c.l.b16 %v1333
    %v1501 = vunpack.c.l.b16 %v1334
    %v1502 = vunpack.c.l.b16 %v1335
    %v1503 = vunpack.c.l.b16 %v1336
    %v1504 = vunpack.c.l.b16 %v1337
    %v1505 = vunpack.c.l.b16 %v1338
    %v1506 = vunpack.c.l.b16 %v1339
    %v1507 = vunpack.c.l.b16 %v1340
    %v1508 = vunpack.c.l.b16 %v1341
    %v1509 = vunpack.c.l.b16 %v1342
    %v1510 = vunpack.c.l.b16 %v1343
    %v1511 = vunpack.c.l.b16 %v1344
    %v1512 = vunpack.c.l.b16 %v1345
    %v1513 = vunpack.c.l.b16 %v1346
    %v1514 = vunpack.c.l.b16 %v1347
    %v1515 = vunpack.c.l.b16 %v1348
    %v1516 = vunpack.c.l.b16 %v1349
    %v1517 = vunpack.c.l.b16 %v1350
    %v1518 = vunpack.c.l.b16 %v1351
    %v1519 = vunpack.c.l.b16 %v1352
    %v1520 = vunpack.c.l.b16 %v1353
    %v1521 = vunpack.c.l.b16 %v1354
    %v1522 = vunpack.c.l.b16 %v1355
    %v1523 = vunpack.c.l.b16 %v1356
    %v1524 = vunpack.c.l.b16 %v1357
    %v1525 = vunpack.c.l.b16 %v1358
    %v1526 = vunpack.c.l.b16 %v1359
    %v1527 = vunpack.c.l.b16 %v1360
    %v1528 = vunpack.c.l.b16 %v1361
    %v1529 = vunpack.c.l.b16 %v1362
    %v1530 = vunpack.c.l.b16 %v1363
    %v1531 = vunpack.c.l.b16 %v1364
    %v1532 = vunpack.c.l.b16 %v1365
    %v1533 = vunpack.c.l.b16 %v1366
    %v1534 = vunpack.c.l.b16 %v1367
    %v1535 = vpack.c.b16 %v1456, %v1455
    %v1536 = vpack.c.b16 %v1458, %v1457
    %v1537 = vpack.c.b16 %v1460, %v1459
    %v1538 = vpack.c.b16 %v1462, %v1461
    %v1539 = vpack.c.b16 %v1464, %v1463
    %v1540 = vpack.c.b16 %v1466, %v1465
    %v1541 = vpack.c.b16 %v1468, %v1467
    %v1542 = vpack.c.b16 %v1470, %v1469
    %v1543 = vpack.c.b16 %v1472, %v1471
    %v1544 = vpack.c.b16 %v1474, %v1473
    %v1545 = vpack.c.b16 %v1476, %v1475
    %v1546 = vpack.c.b16 %v1478, %v1477
    %v1547 = vpack.c.b16 %v1480, %v1479
    %v1548 = vpack.c.b16 %v1482, %v1481
    %v1549 = vpack.c.b16 %v1484, %v1483
    %v1550 = vpack.c.b16 %v1486, %v1485
    %v1551 = vpack.c.b16 %v1488, %v1487
    %v1552 = vpack.c.b16 %v1490, %v1489
    %v1553 = vpack.c.b16 %v1492, %v1491
    %v1554 = vpack.c.b16 %v1494, %v1493
    %v1555 = vpack.c.b16 %v1496, %v1495
    %v1556 = vpack.c.b16 %v1498, %v1497
    %v1557 = vpack.c.b16 %v1500, %v1499
    %v1558 = vpack.c.b16 %v1502, %v1501
    %v1559 = vpack.c.b16 %v1504, %v1503
    %v1560 = vpack.c.b16 %v1506, %v1505
    %v1561 = vpack.c.b16 %v1508, %v1507
    %v1562 = vpack.c.b16 %v1510, %v1509
    %v1563 = vpack.c.b16 %v1512, %v1511
    %v1564 = vpack.c.b16 %v1514, %v1513
    %v1565 = vpack.c.b16 %v1516, %v1515
    %v1566 = vpack.c.b16 %v1518, %v1517
    %v1567 = vpack.c.b16 %v1520, %v1519
    %v1568 = vpack.c.b16 %v1522, %v1521
    %v1569 = vpack.c.b16 %v1524, %v1523
    %v1570 = vpack.c.b16 %v1526, %v1525
    %v1571 = vpack.c.b16 %v1528, %v1527
    %v1572 = vpack.c.b16 %v1530, %v1529
    %v1573 = vpack.c.b16 %v1532, %v1531
    %v1574 = vpack.c.b16 %v1534, %v1533
    %1615 = vmatprep.subr.bf16.mxu0 0
    %1616 = vmatpush1.bf16.msra.mxu0 %v1542
    %1617 = vmatprep.subr.bf16.mxu0 0
    %1618 = vmatpush1.bf16.msra.mxu0 %v1541
    %1619 = vmatprep.subr.bf16.mxu0 0
    %1620 = vmatpush1.bf16.msra.mxu0 %v1540
    %1621 = vmatprep.subr.bf16.mxu0 0
    %1622 = vmatpush1.bf16.msra.mxu0 %v1539
    %1623 = vmatprep.subr.bf16.mxu0 0
    %1624 = vmatpush1.bf16.msra.mxu0 %v1538
    %1625 = vmatprep.subr.bf16.mxu0 0
    %1626 = vmatpush1.bf16.msra.mxu0 %v1537
    %1627 = vmatprep.subr.bf16.mxu0 0
    %1628 = vmatpush1.bf16.msra.mxu0 %v1536
    %1629 = vmatprep.subr.bf16.mxu0 0
    %1630 = vmatpush1.bf16.msra.mxu0 %v1535
    %1631 = vmatprep.subr.bf16.mxu0 0
    %1632 = vmatpush2.bf16.msra.mxu0 %v1550
    %1633 = vmatprep.subr.bf16.mxu0 0
    %1634 = vmatpush2.bf16.msra.mxu0 %v1549
    %1635 = vmatprep.subr.bf16.mxu0 0
    %1636 = vmatpush2.bf16.msra.mxu0 %v1548
    %1637 = vmatprep.subr.bf16.mxu0 0
    %1638 = vmatpush2.bf16.msra.mxu0 %v1547
    %1639 = vmatprep.subr.bf16.mxu0 0
    %1640 = vmatpush2.bf16.msra.mxu0 %v1546
    %1641 = vmatprep.subr.bf16.mxu0 0
    %1642 = vmatpush2.bf16.msra.mxu0 %v1545
    %1643 = vmatprep.subr.bf16.mxu0 0
    %1644 = vmatpush2.bf16.msra.mxu0 %v1544
    %1645 = vmatprep.subr.bf16.mxu0 0
    %1646 = vmatpush2.bf16.msra.mxu0 %v1543
    %1647 = vmatprep.mubr.bf16.mxu0 %v1284
    %1648 = vmatmul.mubr.bf16.gmra.mxu0 %v1283
    %v1649 = vpop.f32.mrf.mxu0
    %v1650 = vadd.f32 %v1373, %v1649
    %v1651 = vpop.f32.mrf.mxu0
    %v1652 = vpop.f32.mrf.mxu0
    %v1653 = vpop.f32.mrf.mxu0
    %1654 = vdwg.mxu0
    %1655 = vmatprep.subr.bf16.mxu0 0
    %1656 = vmatpush1.bf16.msra.mxu0 %v1558
    %1657 = vmatprep.subr.bf16.mxu0 0
    %1658 = vmatpush1.bf16.msra.mxu0 %v1557
    %1659 = vmatprep.subr.bf16.mxu0 0
    %1660 = vmatpush1.bf16.msra.mxu0 %v1556
    %1661 = vmatprep.subr.bf16.mxu0 0
    %1662 = vmatpush1.bf16.msra.mxu0 %v1555
    %1663 = vmatprep.subr.bf16.mxu0 0
    %1664 = vmatpush1.bf16.msra.mxu0 %v1554
    %1665 = vmatprep.subr.bf16.mxu0 0
    %1666 = vmatpush1.bf16.msra.mxu0 %v1553
    %1667 = vmatprep.subr.bf16.mxu0 0
    %1668 = vmatpush1.bf16.msra.mxu0 %v1552
    %1669 = vmatprep.subr.bf16.mxu0 0
    %1670 = vmatpush1.bf16.msra.mxu0 %v1551
    %1671 = vmatprep.subr.bf16.mxu0 0
    %1672 = vmatpush2.bf16.msra.mxu0 %v1566
    %1673 = vmatprep.subr.bf16.mxu0 0
    %1674 = vmatpush2.bf16.msra.mxu0 %v1565
    %1675 = vmatprep.subr.bf16.mxu0 0
    %1676 = vmatpush2.bf16.msra.mxu0 %v1564
    %1677 = vmatprep.subr.bf16.mxu0 0
    %1678 = vmatpush2.bf16.msra.mxu0 %v1563
    %1679 = vmatprep.subr.bf16.mxu0 0
    %1680 = vmatpush2.bf16.msra.mxu0 %v1562
    %1681 = vmatprep.subr.bf16.mxu0 0
    %1682 = vmatpush2.bf16.msra.mxu0 %v1561
    %1683 = vmatprep.subr.bf16.mxu0 0
    %1684 = vmatpush2.bf16.msra.mxu0 %v1560
    %1685 = vmatprep.subr.bf16.mxu0 0
    %1686 = vmatpush2.bf16.msra.mxu0 %v1559
    %1687 = vmatprep.mubr.bf16.mxu0 %v1286
    %1688 = vmatmul.mubr.bf16.gmra.mxu0 %v1285
    %v1689 = vpop.f32.mrf.mxu0
    %v1690 = vadd.f32 %v1650, %v1689
    %v1691 = vpop.f32.mrf.mxu0
    %v1692 = vpop.f32.mrf.mxu0
    %v1693 = vpop.f32.mrf.mxu0
    %1694 = vdwg.mxu0
    %1695 = vmatprep.subr.bf16.mxu0 0
    %1696 = vmatpush1.bf16.msra.mxu0 %v1574
    %1697 = vmatprep.subr.bf16.mxu0 0
    %1698 = vmatpush1.bf16.msra.mxu0 %v1573
    %1699 = vmatprep.subr.bf16.mxu0 0
    %1700 = vmatpush1.bf16.msra.mxu0 %v1572
    %1701 = vmatprep.subr.bf16.mxu0 0
    %1702 = vmatpush1.bf16.msra.mxu0 %v1571
    %1703 = vmatprep.subr.bf16.mxu0 0
    %1704 = vmatpush1.bf16.msra.mxu0 %v1570
    %1705 = vmatprep.subr.bf16.mxu0 0
    %1706 = vmatpush1.bf16.msra.mxu0 %v1569
    %1707 = vmatprep.subr.bf16.mxu0 0
    %1708 = vmatpush1.bf16.msra.mxu0 %v1568
    %1709 = vmatprep.subr.bf16.mxu0 0
    %1710 = vmatpush1.bf16.msra.mxu0 %v1567
    %1711 = vmatprep.subr.bf16.mxu0 0
    %1712 = vmatpush2.bf16.msra.mxu0 0
    %1713 = vmatprep.subr.bf16.mxu0 0
    %1714 = vmatpush2.bf16.msra.mxu0 0
    %1715 = vmatprep.subr.bf16.mxu0 0
    %1716 = vmatpush2.bf16.msra.mxu0 0
    %1717 = vmatprep.subr.bf16.mxu0 0
    %1718 = vmatpush2.bf16.msra.mxu0 0
    %1719 = vmatprep.subr.bf16.mxu0 0
    %1720 = vmatpush2.bf16.msra.mxu0 0
    %1721 = vmatprep.subr.bf16.mxu0 0
    %1722 = vmatpush2.bf16.msra.mxu0 0
    %1723 = vmatprep.subr.bf16.mxu0 0
    %1724 = vmatpush2.bf16.msra.mxu0 0
    %1725 = vmatprep.subr.bf16.mxu0 0
    %1726 = vmatpush2.bf16.msra.mxu0 0
    %1727 = vmatprep.mubr.bf16.mxu0 0
    %1728 = vmatmul.mubr.bf16.gmra.mxu0 %v1287
    %v1729 = vpop.f32.mrf.mxu0
    %v1730 = vadd.f32 %v1690, %v1729
    %v1731 = vpop.f32.mrf.mxu0
    %v1732 = vpop.f32.mrf.mxu0
    %v1733 = vpop.f32.mrf.mxu0
    %1734 = vdwg.mxu0
    %1735 = vst [vmem:[#allocation8] sm:$0x3] %v1730
    %v1736 = vld [vmem:[%s7] sm:$0x1]
    %v1737 = vmul.f32 %v1736, 1.442695
    %v1738 = vpow.pop %v1737
    %v1739 = vld [vmem:[%s8] sm:$0x3]
    %v1741 = vlaneseq
    %v1742 = vshrl.u32 %v1741, 7
    %v1743 = vsub.s32 0, %v1742
    %v1744 = vrot.slane %v1738, %v1743
    %v1746 = vmul.f32 %v1744, %v1739
    %v1747 = vadd.f32 %v1730, %v1746
    %v1748 = vlaneseq
    %v1749 = vand.u32 %v1748, 127
    %vm1750 = vcmp.lt.s32.totalorder %v1749, 3
    %vm1751 = vcmp.eq.s32.totalorder %v1749, 0
    %v1752 = vtanh.pop %v1747
    %v1753 = vsub.f32 0.0, %v1747
    %v1754 = vmul.f32 %v1753, 1.442695
    %v1755 = vpow.pop %v1754
    %v1756 = vadd.f32 %v1755, 1.0
    %v1757 = vrcp.pop %v1756
    %v1758 = vmul.f32 1.0, %v1757
    %v1759 = vsel %vm1751, %v1752, %v1758
    %v1760 = vsel %vm1750, %v1759, 0.0
    %1761 = vst [vmem:[#allocation9] sm:$0x1] %v1760
    %v1762 = vmul.f32 %v1738, %v1738
    %v1763 = vlaneseq
    %v1764 = vshrl.u32 %v1763, 7
    %v1765 = vsub.s32 0, %v1764
    %v1766 = vrot.slane %v1760, %v1765
    %v1767 = vsub.f32 %v1766, %v1730
    %v1768 = vmul.f32 %v1767, %v1767
    %v1769 = vsub.f32 0.0, %v1768
    %v1770 = vmul.f32 %v1762, 2.0
    %v1772 = vlaneseq
    %v1773 = vshrl.u32 %v1772, 7
    %v1774 = vsub.s32 0, %v1773
    %v1775 = vrot.slane %v1770, %v1774
    %v1777 = vrcp.pop %v1775
    %v1778 = vmul.f32 %v1769, %v1777
    %v1779 = vsub.f32 %v1778, 0.9189385
    %v1781 = vlaneseq
    %v1782 = vshrl.u32 %v1781, 7
    %v1783 = vsub.s32 0, %v1782
    %v1784 = vrot.slane %v1736, %v1783
    %v1786 = vsub.f32 %v1779, %v1784
    %v1787 = vsel %vm1750, 1, 0
    %vm1788 = vcmp.eq.s32.totalorder %v1787, 1
    %v1789 = vsel %vm1788, %v1786, 0.0
    %vm1790 = vcmask 1041408
    %v1791 = vsel %vm1790, %v1789, 0.0
    %1792 = vadd.xlane.f32.xlu0 %v1791
    %v1793 = vpop.xlane.xlu0 %1792
    %1794 = vst [vmem:[%s11] sm:$0x3] %v1793
    // Predicated region
    $region50: #{actor_forward.1} parent=1 // pred_check
      _
    $region51: #{actor_forward.1} parent=1 // pred_check_branch
      %1796 = sbr.rel (0) target = $region53
    $region52: #{actor_forward.1} parent=1 // pred_region
      %s1798 = ssub.s32 32, 32
      %1799 = vsyncadd [#allocation4], %s1798
      %s1801 = sshll.u32 [#allocation8], 4
      %s1802 = int_to_ptr.vmem [resolvable:$true] %s1801
      %1804 = dma.vmem_to_hbm [thread:$0]  %s1802, 32, %s9, [#allocation4]
    $region53: #{actor_forward.1} parent=1 // pred_fallthru
      _
    // Predicated region
    $region54: #{actor_forward.1} parent=1 // pred_check
      _
    $region55: #{actor_forward.1} parent=1 // pred_check_branch
      %1806 = sbr.rel (0) target = $region57
    $region56: #{actor_forward.1} parent=1 // pred_region
      %s1808 = ssub.s32 16, 16
      %1809 = vsyncadd [#allocation10], %s1808
      %s1811 = sshll.u32 [#allocation9], 4
      %s1812 = int_to_ptr.vmem [resolvable:$true] %s1811
      %1814 = dma.vmem_to_hbm [thread:$0]  %s1812, 16, %s10, [#allocation10]
    $region57: #{actor_forward.1} parent=1 // pred_fallthru
      _
    // Predicated region
    $region58: #{actor_forward.1} parent=1 // pred_check
      _
    $region59: #{actor_forward.1} parent=1 // pred_check_branch
      %1816 = sbr.rel (0) target = $region61
    $region60: #{actor_forward.1} parent=1 // pred_region
      _
    $region61: #{actor_forward.1} parent=1 // pred_fallthru
      _
    // Predicated region
    $region62: #{actor_forward.1} parent=1 // pred_check
      _
    $region63: #{actor_forward.1} parent=1 // pred_check_branch
      %1818 = sbr.rel (0) target = $region65
    $region64: #{actor_forward.1} parent=1 // pred_region
      %1819 = dma.done [#allocation4], 32
    $region65: #{actor_forward.1} parent=1 // pred_fallthru
      _
    // Predicated region
    $region66: #{actor_forward.1} parent=1 // pred_check
      _
    $region67: #{actor_forward.1} parent=1 // pred_check_branch
      %1821 = sbr.rel (0) target = $region69
    $region68: #{actor_forward.1} parent=1 // pred_region
      %1822 = dma.done [#allocation10], 16
    $region69: #{actor_forward.1} parent=1 // pred_fallthru
      _
    // Predicated region
    $region70: #{actor_forward.1} parent=1 // pred_check
      _
    $region71: #{actor_forward.1} parent=1 // pred_check_branch
      %1824 = sbr.rel (0) target = $region73
    $region72: #{actor_forward.1} parent=1 // pred_region
      _
    $region73: #{actor_forward.1} parent=1 // pred_fallthru
      _
    %1825 = vsyncpa [#allocation3], 1
    %1826 = vsyncpa [#allocation6], 1
    %1827 = vsyncpa [#allocation4], 1
    %1828 = vsyncpa [#allocation10], 1

</llo_original>
